<compile_context>
chip_gen: v6e
topology: v6e:2x2x1
jax: 0.10.0
libtpu: 0.0.40
codegen_flags: <defaults>
</compile_context>

<pallas_src>
import functools

import jax
import jax.numpy as jnp
from jax.experimental import pallas as pl
from jax.experimental.pallas import tpu as pltpu  # noqa: F401  (kept for TPU backend)

LANE = 128  # TPU lane width


def _pad_axis(x, axis, multiple):
    pad = (-x.shape[axis]) % multiple
    if pad == 0:
        return x
    widths = [(0, 0)] * x.ndim
    widths[axis] = (0, pad)
    return jnp.pad(x, widths)


# ----------------------------------------------------------------------------
# Fused kernel: whole Net forward in one grid step, all refs in VMEM.
#   h   = relu(A @ (X @ W_l) + b_l)   for l = 1..3
#   out = h @ W_fc + b_fc             (W_fc / b_fc lane-padded to 128)
# bf16 operands on the MXU, f32 accumulation, single store of the final tile.
# ----------------------------------------------------------------------------
def _gcn_net_kernel(a_ref, x_ref,
                    w1_ref, b1_ref, w2_ref, b2_ref, w3_ref, b3_ref,
                    wfc_ref, bfc_ref, o_ref):
    a = a_ref[...]                                            # (N, N) f32

    def graph_conv(h_bf16, w_ref, b_ref):
        xw = jnp.dot(h_bf16, w_ref[...],
                     preferred_element_type=jnp.float32)      # (N, 128) f32
        hw = jnp.dot(a, xw,
                     preferred_element_type=jnp.float32) + b_ref[...]
        return jnp.maximum(hw, 0.0)

    h = graph_conv(x_ref[...], w1_ref, b1_ref)
    h = graph_conv(h.astype(jnp.bfloat16), w2_ref, b2_ref)
    h = graph_conv(h.astype(jnp.bfloat16), w3_ref, b3_ref)
    o_ref[...] = jnp.dot(h.astype(jnp.bfloat16), wfc_ref[...],
                         preferred_element_type=jnp.float32) + bfc_ref[...]


# ----------------------------------------------------------------------------
# One-time parameter packing (padding / bf16 cast hoisted out of the forward).
# ----------------------------------------------------------------------------
def pack_params(params):
    (w1, b1), (w2, b2), (w3, b3) = params["gcn"]
    w_fc, b_fc = params["fc"]
    return dict(
        w1=_pad_axis(w1, 0, LANE).astype(jnp.bfloat16),            # (1536, 128)
        b1=b1.reshape(1, -1).astype(jnp.float32),
        w2=w2.astype(jnp.bfloat16),
        b2=b2.reshape(1, -1).astype(jnp.float32),
        w3=w3.astype(jnp.bfloat16),
        b3=b3.reshape(1, -1).astype(jnp.float32),
        w_fc=_pad_axis(w_fc, 1, LANE).astype(jnp.bfloat16),        # (128, 128)
        b_fc=_pad_axis(b_fc.reshape(1, -1), 1, LANE).astype(jnp.float32),
    )


@functools.partial(jax.jit, static_argnames=("out_dim",))
def net_forward(a_norm, features, packed, *, out_dim):
    n = features.shape[0]
    # K padded 1433 -> 1536 (zero columns, matches zero-padded rows of W1: exact).
    x = _pad_axis(features, 1, LANE).astype(jnp.bfloat16)
    out = pl.pallas_call(
        _gcn_net_kernel,
        out_shape=jax.ShapeDtypeStruct((n, packed["w_fc"].shape[1]), jnp.float32),
    )(a_norm.astype(jnp.float32), x,
      packed["w1"], packed["b1"],
      packed["w2"], packed["b2"],
      packed["w3"], packed["b3"],
      packed["w_fc"], packed["b_fc"])
    return out[:, :out_dim]


# ----------------------------------------------------------------------------
# Pure-JAX f32 reference (same math as the PyTorch module).
# ----------------------------------------------------------------------------
def reference_forward(a_norm, features, params):
    h = features
    for w, b in params["gcn"]:
        h = jax.nn.relu(a_norm @ (h @ w) + b)
    w_fc, b_fc = params["fc"]
    return h @ w_fc + b_fc


# ----------------------------------------------------------------------------
# Deterministic parameter / input construction
# ----------------------------------------------------------------------------
def _glorot(key, fan_in, fan_out):
    limit = jnp.sqrt(6.0 / (fan_in + fan_out))
    return jax.random.uniform(
        key, (fan_in, fan_out), jnp.float32, minval=-limit, maxval=limit
    )


def make_params(key):
    dims = [(1433, 128), (128, 128), (128, 128)]
    keys = jax.random.split(key, len(dims) + 1)
    gcn = []
    for k, (fi, fo) in zip(keys[:-1], dims):
        gcn.append((_glorot(k, fi, fo), jnp.zeros((fo,), jnp.float32)))
    kf1, kf2 = jax.random.split(keys[-1])
    w_fc = _glorot(kf1, 128, 7)
    b_fc = 0.01 * jax.random.normal(kf2, (7,), jnp.float32)
    return {"gcn": gcn, "fc": (w_fc, b_fc)}


def make_graph(key, n_nodes):
    """Dense symmetric random graph with self loops, GCN-normalized (norm='both')."""
    a = (jax.random.uniform(key, (n_nodes, n_nodes)) < 0.1).astype(jnp.float32)
    a = jnp.maximum(a, a.T)
    a = jnp.maximum(a, jnp.eye(n_nodes, dtype=jnp.float32))   # self loops
    deg = jnp.sum(a, axis=1)
    d_inv_sqrt = 1.0 / jnp.sqrt(deg)
    return a * d_inv_sqrt[:, None] * d_inv_sqrt[None, :]


if __name__ == "__main__":
    # TODO(synk): DGL's sparse SpMM message passing is modeled as a dense
    # normalized-adjacency matmul (identical math for norm='both' + self loops).
    key = jax.random.PRNGKey(0)
    k_graph, k_feat, k_params = jax.random.split(key, 3)

    n_nodes, in_feats = 32, 1433
    a_norm = make_graph(k_graph, n_nodes)                        # (32, 32)
    features = (jax.random.uniform(k_feat, (n_nodes, in_feats)) < 0.05
                ).astype(jnp.float32)                            # (32, 1433) sparse-ish
    params = make_params(k_params)
    packed = pack_params(params)                                 # pad/cast once

    logits = net_forward(a_norm, features, packed, out_dim=7)
    logits = jax.block_until_ready(logits)

    assert logits.shape == (n_nodes, 7), logits.shape
    assert bool(jnp.all(jnp.isfinite(logits)))

    ref = reference_forward(a_norm, features, params)
    max_err = float(jnp.max(jnp.abs(logits - ref)))
    assert max_err < 0.1, f"max abs err vs f32 reference: {max_err}"
    print("KERNEL_OK")
</pallas_src>

<mosaic_0001>
module attributes {stable_mosaic.version = 11 : i64} {
  func.func @_gcn_net_kernel(%arg0: memref<32x32xf32, #tpu.memory_space<vmem>>, %arg1: memref<32x1536xbf16, #tpu.memory_space<vmem>>, %arg2: memref<1536x128xbf16, #tpu.memory_space<vmem>>, %arg3: memref<1x128xf32, #tpu.memory_space<vmem>>, %arg4: memref<128x128xbf16, #tpu.memory_space<vmem>>, %arg5: memref<1x128xf32, #tpu.memory_space<vmem>>, %arg6: memref<128x128xbf16, #tpu.memory_space<vmem>>, %arg7: memref<1x128xf32, #tpu.memory_space<vmem>>, %arg8: memref<128x128xbf16, #tpu.memory_space<vmem>>, %arg9: memref<1x128xf32, #tpu.memory_space<vmem>>, %arg10: memref<32x128xf32, #tpu.memory_space<vmem>>) attributes {dimension_semantics = [], scalar_prefetch = 0 : i64, scratch_operands = 0 : i64, tpu.core_type = #tpu.core_type<tc>} {
    %c0 = arith.constant 0 : index
    %c0_0 = arith.constant 0 : index
    %0 = vector.load %arg0[%c0, %c0_0] : memref<32x32xf32, #tpu.memory_space<vmem>>, vector<32x32xf32>
    %c0_1 = arith.constant 0 : index
    %c0_2 = arith.constant 0 : index
    %1 = vector.load %arg1[%c0_1, %c0_2] : memref<32x1536xbf16, #tpu.memory_space<vmem>>, vector<32x1536xbf16>
    %c0_3 = arith.constant 0 : index
    %c0_4 = arith.constant 0 : index
    %2 = vector.load %arg2[%c0_3, %c0_4] : memref<1536x128xbf16, #tpu.memory_space<vmem>>, vector<1536x128xbf16>
    %cst = arith.constant dense<0.000000e+00> : vector<32x128xf32>
    %3 = tpu.matmul %1, %2, %cst {dimension_numbers = #tpu.dot_dimension_numbers<[1], [0], [0], [1], [0, 0, 1, 1], [], []>} : vector<32x1536xbf16>, vector<1536x128xbf16>, vector<32x128xf32> -> vector<32x128xf32>
    %cst_5 = arith.constant dense<0.000000e+00> : vector<32x128xf32>
    %4 = tpu.matmul %0, %3, %cst_5 {dimension_numbers = #tpu.dot_dimension_numbers<[1], [0], [0], [1], [0, 0, 1, 1], [], []>} : vector<32x32xf32>, vector<32x128xf32>, vector<32x128xf32> -> vector<32x128xf32>
    %c0_6 = arith.constant 0 : index
    %c0_7 = arith.constant 0 : index
    %5 = vector.load %arg3[%c0_6, %c0_7] : memref<1x128xf32, #tpu.memory_space<vmem>>, vector<1x128xf32>
    %6 = vector.broadcast %5 : vector<1x128xf32> to vector<32x128xf32>
    %7 = arith.addf %4, %6 : vector<32x128xf32>
    %cst_8 = arith.constant 0.000000e+00 : f32
    %8 = vector.broadcast %cst_8 : f32 to vector<32x128xf32>
    %9 = arith.maximumf %7, %8 : vector<32x128xf32>
    %10 = arith.truncf %9 : vector<32x128xf32> to vector<32x128xbf16>
    %c0_9 = arith.constant 0 : index
    %c0_10 = arith.constant 0 : index
    %11 = vector.load %arg4[%c0_9, %c0_10] : memref<128x128xbf16, #tpu.memory_space<vmem>>, vector<128x128xbf16>
    %cst_11 = arith.constant dense<0.000000e+00> : vector<32x128xf32>
    %12 = tpu.matmul %10, %11, %cst_11 {dimension_numbers = #tpu.dot_dimension_numbers<[1], [0], [0], [1], [0, 0, 1, 1], [], []>} : vector<32x128xbf16>, vector<128x128xbf16>, vector<32x128xf32> -> vector<32x128xf32>
    %cst_12 = arith.constant dense<0.000000e+00> : vector<32x128xf32>
    %13 = tpu.matmul %0, %12, %cst_12 {dimension_numbers = #tpu.dot_dimension_numbers<[1], [0], [0], [1], [0, 0, 1, 1], [], []>} : vector<32x32xf32>, vector<32x128xf32>, vector<32x128xf32> -> vector<32x128xf32>
    %c0_13 = arith.constant 0 : index
    %c0_14 = arith.constant 0 : index
    %14 = vector.load %arg5[%c0_13, %c0_14] : memref<1x128xf32, #tpu.memory_space<vmem>>, vector<1x128xf32>
    %15 = vector.broadcast %14 : vector<1x128xf32> to vector<32x128xf32>
    %16 = arith.addf %13, %15 : vector<32x128xf32>
    %cst_15 = arith.constant 0.000000e+00 : f32
    %17 = vector.broadcast %cst_15 : f32 to vector<32x128xf32>
    %18 = arith.maximumf %16, %17 : vector<32x128xf32>
    %19 = arith.truncf %18 : vector<32x128xf32> to vector<32x128xbf16>
    %c0_16 = arith.constant 0 : index
    %c0_17 = arith.constant 0 : index
    %20 = vector.load %arg6[%c0_16, %c0_17] : memref<128x128xbf16, #tpu.memory_space<vmem>>, vector<128x128xbf16>
    %cst_18 = arith.constant dense<0.000000e+00> : vector<32x128xf32>
    %21 = tpu.matmul %19, %20, %cst_18 {dimension_numbers = #tpu.dot_dimension_numbers<[1], [0], [0], [1], [0, 0, 1, 1], [], []>} : vector<32x128xbf16>, vector<128x128xbf16>, vector<32x128xf32> -> vector<32x128xf32>
    %cst_19 = arith.constant dense<0.000000e+00> : vector<32x128xf32>
    %22 = tpu.matmul %0, %21, %cst_19 {dimension_numbers = #tpu.dot_dimension_numbers<[1], [0], [0], [1], [0, 0, 1, 1], [], []>} : vector<32x32xf32>, vector<32x128xf32>, vector<32x128xf32> -> vector<32x128xf32>
    %c0_20 = arith.constant 0 : index
    %c0_21 = arith.constant 0 : index
    %23 = vector.load %arg7[%c0_20, %c0_21] : memref<1x128xf32, #tpu.memory_space<vmem>>, vector<1x128xf32>
    %24 = vector.broadcast %23 : vector<1x128xf32> to vector<32x128xf32>
    %25 = arith.addf %22, %24 : vector<32x128xf32>
    %cst_22 = arith.constant 0.000000e+00 : f32
    %26 = vector.broadcast %cst_22 : f32 to vector<32x128xf32>
    %27 = arith.maximumf %25, %26 : vector<32x128xf32>
    %28 = arith.truncf %27 : vector<32x128xf32> to vector<32x128xbf16>
    %c0_23 = arith.constant 0 : index
    %c0_24 = arith.constant 0 : index
    %29 = vector.load %arg8[%c0_23, %c0_24] : memref<128x128xbf16, #tpu.memory_space<vmem>>, vector<128x128xbf16>
    %cst_25 = arith.constant dense<0.000000e+00> : vector<32x128xf32>
    %30 = tpu.matmul %28, %29, %cst_25 {dimension_numbers = #tpu.dot_dimension_numbers<[1], [0], [0], [1], [0, 0, 1, 1], [], []>} : vector<32x128xbf16>, vector<128x128xbf16>, vector<32x128xf32> -> vector<32x128xf32>
    %c0_26 = arith.constant 0 : index
    %c0_27 = arith.constant 0 : index
    %31 = vector.load %arg9[%c0_26, %c0_27] : memref<1x128xf32, #tpu.memory_space<vmem>>, vector<1x128xf32>
    %32 = vector.broadcast %31 : vector<1x128xf32> to vector<32x128xf32>
    %33 = arith.addf %30, %32 : vector<32x128xf32>
    %c0_28 = arith.constant 0 : index
    %c0_29 = arith.constant 0 : index
    %34 = vector.load %arg10[%c0_28, %c0_29] : memref<32x128xf32, #tpu.memory_space<vmem>>, vector<32x128xf32>
    tpu.vector_store %arg10[%c0_28, %c0_29], %33 {strides = array<i32>} : memref<32x128xf32, #tpu.memory_space<vmem>>, vector<32x128xf32>,
    return
  }
}

</mosaic_0001>

<llo_original>
// kernel: net_forward.1
$region0: #{net_forward.1}
  #allocation0 [shape = 'u32[]', space=smem, size = 0x4, offset = 0x4, fixed_abs, tag = 'smem constant byte address 0x4 - core index']
  #allocation1 [shape = 'u32[144,128]{1,0:T(1,128)}', space=vmem, size = 0x12000, scoped, tag = 'internal scratch']
  %s0 = inlined_call_operand.hbm [shape: f32[32,32], index: 0, kind: input, shape index: {}]
  %s1 = inlined_call_operand.vmem [shape: bf16[32,1536], index: 1, kind: input, shape index: {}]
  %s2 = inlined_call_operand.vmem [shape: bf16[1536,128], index: 2, kind: input, shape index: {}]
  %s3 = inlined_call_operand.vmem [shape: f32[1,128], index: 3, kind: input, shape index: {}]
  %s4 = inlined_call_operand.vmem [shape: bf16[128,128], index: 4, kind: input, shape index: {}]
  %s5 = inlined_call_operand.vmem [shape: f32[1,128], index: 5, kind: input, shape index: {}]
  %s6 = inlined_call_operand.vmem [shape: bf16[128,128], index: 6, kind: input, shape index: {}]
  %s7 = inlined_call_operand.vmem [shape: f32[1,128], index: 7, kind: input, shape index: {}]
  %s8 = inlined_call_operand.vmem [shape: bf16[128,128], index: 8, kind: input, shape index: {}]
  %s9 = inlined_call_operand.vmem [shape: f32[1,128], index: 9, kind: input, shape index: {}]
  %s10 = inlined_call_operand.vmem [shape: f32[32,128], index: 10, kind: output, shape index: {}]
  %s11 = sld [smem:[#allocation0]]
  $region54: #{net_forward.1} parent=0
    _
  %s13 = ssub.s32 1, %s11
  %s14 = scalar_select 0, %s13, %s11
  $region1: #{net_forward.1} parent=0
    #allocation2 [shape = 'u8[16384]{0}', space=vmem, size = 0x4000, scoped, tag = 'input window, operand 0, single buffered']
    #allocation3 [shape = 's32[1]{0}', space=sflag, size = 0x4, scoped, tag = 'scoped memory for net_forward.1']
    %15 = vsyncpa [#allocation3], 0
    // Predicated region
    $region2: #{net_forward.1} parent=1 // pred_check
      _
    $region3: #{net_forward.1} parent=1 // pred_check_branch
      %17 = sbr.rel (0) target = $region5
    $region4: #{net_forward.1} parent=1 // pred_region
      %s19 = ssub.s32 512, 512
      %20 = vsyncadd [#allocation3], %s19
      %s21 = sshll.u32 [#allocation2], 4
      %s22 = int_to_ptr.vmem [resolvable:$true] %s21
      %27 = dma.hbm_to_vmem [thread:$0]  %s0, 512, %s22, [#allocation3], 128, 128, 8
    $region5: #{net_forward.1} parent=1 // pred_fallthru
      _
    // Predicated region
    $region6: #{net_forward.1} parent=1 // pred_check
      _
    $region7: #{net_forward.1} parent=1 // pred_check_branch
      %29 = sbr.rel (0) target = $region9
    $region8: #{net_forward.1} parent=1 // pred_region
      _
    $region9: #{net_forward.1} parent=1 // pred_fallthru
      _
    // Predicated region
    $region10: #{net_forward.1} parent=1 // pred_check
      _
    $region11: #{net_forward.1} parent=1 // pred_check_branch
      %31 = sbr.rel (0) target = $region13
    $region12: #{net_forward.1} parent=1 // pred_region
      _
    $region13: #{net_forward.1} parent=1 // pred_fallthru
      _
    // Predicated region
    $region14: #{net_forward.1} parent=1 // pred_check
      _
    $region15: #{net_forward.1} parent=1 // pred_check_branch
      %33 = sbr.rel (0) target = $region17
    $region16: #{net_forward.1} parent=1 // pred_region
      _
    $region17: #{net_forward.1} parent=1 // pred_fallthru
      _
    // Predicated region
    $region18: #{net_forward.1} parent=1 // pred_check
      _
    $region19: #{net_forward.1} parent=1 // pred_check_branch
      %35 = sbr.rel (0) target = $region21
    $region20: #{net_forward.1} parent=1 // pred_region
      _
    $region21: #{net_forward.1} parent=1 // pred_fallthru
      _
    // Predicated region
    $region22: #{net_forward.1} parent=1 // pred_check
      _
    $region23: #{net_forward.1} parent=1 // pred_check_branch
      %37 = sbr.rel (0) target = $region25
    $region24: #{net_forward.1} parent=1 // pred_region
      _
    $region25: #{net_forward.1} parent=1 // pred_fallthru
      _
    // Predicated region
    $region26: #{net_forward.1} parent=1 // pred_check
      _
    $region27: #{net_forward.1} parent=1 // pred_check_branch
      %39 = sbr.rel (0) target = $region29
    $region28: #{net_forward.1} parent=1 // pred_region
      _
    $region29: #{net_forward.1} parent=1 // pred_fallthru
      _
    // Predicated region
    $region30: #{net_forward.1} parent=1 // pred_check
      _
    $region31: #{net_forward.1} parent=1 // pred_check_branch
      %41 = sbr.rel (0) target = $region33
    $region32: #{net_forward.1} parent=1 // pred_region
      _
    $region33: #{net_forward.1} parent=1 // pred_fallthru
      _
    // Predicated region
    $region34: #{net_forward.1} parent=1 // pred_check
      _
    $region35: #{net_forward.1} parent=1 // pred_check_branch
      %43 = sbr.rel (0) target = $region37
    $region36: #{net_forward.1} parent=1 // pred_region
      _
    $region37: #{net_forward.1} parent=1 // pred_fallthru
      _
    // Predicated region
    $region38: #{net_forward.1} parent=1 // pred_check
      _
    $region39: #{net_forward.1} parent=1 // pred_check_branch
      %45 = sbr.rel (0) target = $region41
    $region40: #{net_forward.1} parent=1 // pred_region
      _
    $region41: #{net_forward.1} parent=1 // pred_fallthru
      _
    // Predicated region
    $region42: #{net_forward.1} parent=1 // pred_check
      _
    $region43: #{net_forward.1} parent=1 // pred_check_branch
      %47 = sbr.rel (0) target = $region45
    $region44: #{net_forward.1} parent=1 // pred_region
      %48 = dma.done [#allocation3], 512
    $region45: #{net_forward.1} parent=1 // pred_fallthru
      _
    %v50 = vld [vmem:[#allocation2] sm:$0xff]
    %v51 = vld [vmem:[#allocation2 + $0x8] sm:$0xff]
    %v52 = vld [vmem:[#allocation2 + $0x10] sm:$0xff]
    %v53 = vld [vmem:[#allocation2 + $0x18] sm:$0xff]
    %v54 = vld [vmem:[%s1] sm:$0xff]
    %v55 = vld [vmem:[%s1 + $0x8] sm:$0xff]
    %v56 = vld [vmem:[%s1 + $0x10] sm:$0xff]
    %v57 = vld [vmem:[%s1 + $0x18] sm:$0xff]
    %v58 = vld [vmem:[%s1 + $0x20] sm:$0xff]
    %v59 = vld [vmem:[%s1 + $0x28] sm:$0xff]
    %v60 = vld [vmem:[%s1 + $0x30] sm:$0xff]
    %v61 = vld [vmem:[%s1 + $0x38] sm:$0xff]
    %v62 = vld [vmem:[%s1 + $0x40] sm:$0xff]
    %v63 = vld [vmem:[%s1 + $0x48] sm:$0xff]
    %v64 = vld [vmem:[%s1 + $0x50] sm:$0xff]
    %v65 = vld [vmem:[%s1 + $0x58] sm:$0xff]
    %v66 = vld [vmem:[%s1 + $0x60] sm:$0xff]
    %v67 = vld [vmem:[%s1 + $0x68] sm:$0xff]
    %v68 = vld [vmem:[%s1 + $0x70] sm:$0xff]
    %v69 = vld [vmem:[%s1 + $0x78] sm:$0xff]
    %v70 = vld [vmem:[%s1 + $0x80] sm:$0xff]
    %v71 = vld [vmem:[%s1 + $0x88] sm:$0xff]
    %v72 = vld [vmem:[%s1 + $0x90] sm:$0xff]
    %v73 = vld [vmem:[%s1 + $0x98] sm:$0xff]
    %v74 = vld [vmem:[%s1 + $0xa0] sm:$0xff]
    %v75 = vld [vmem:[%s1 + $0xa8] sm:$0xff]
    %v76 = vld [vmem:[%s1 + $0xb0] sm:$0xff]
    %v77 = vld [vmem:[%s1 + $0xb8] sm:$0xff]
    %v78 = vld [vmem:[%s2] sm:$0xf]
    %v79 = vld [vmem:[%s2 + $0x4] sm:$0xf]
    %v80 = vld [vmem:[%s2 + $0x8] sm:$0xf]
    %v81 = vld [vmem:[%s2 + $0xc] sm:$0xf]
    %v82 = vld [vmem:[%s2 + $0x10] sm:$0xf]
    %v83 = vld [vmem:[%s2 + $0x14] sm:$0xf]
    %v84 = vld [vmem:[%s2 + $0x18] sm:$0xf]
    %v85 = vld [vmem:[%s2 + $0x1c] sm:$0xf]
    %v86 = vld [vmem:[%s2 + $0x20] sm:$0xf]
    %v87 = vld [vmem:[%s2 + $0x24] sm:$0xf]
    %v88 = vld [vmem:[%s2 + $0x28] sm:$0xf]
    %v89 = vld [vmem:[%s2 + $0x2c] sm:$0xf]
    %v90 = vld [vmem:[%s2 + $0x30] sm:$0xf]
    %v91 = vld [vmem:[%s2 + $0x34] sm:$0xf]
    %v92 = vld [vmem:[%s2 + $0x38] sm:$0xf]
    %v93 = vld [vmem:[%s2 + $0x3c] sm:$0xf]
    %v94 = vld [vmem:[%s2 + $0x40] sm:$0xf]
    %v95 = vld [vmem:[%s2 + $0x44] sm:$0xf]
    %v96 = vld [vmem:[%s2 + $0x48] sm:$0xf]
    %v97 = vld [vmem:[%s2 + $0x4c] sm:$0xf]
    %v98 = vld [vmem:[%s2 + $0x50] sm:$0xf]
    %v99 = vld [vmem:[%s2 + $0x54] sm:$0xf]
    %v100 = vld [vmem:[%s2 + $0x58] sm:$0xf]
    %v101 = vld [vmem:[%s2 + $0x5c] sm:$0xf]
    %v102 = vld [vmem:[%s2 + $0x60] sm:$0xf]
    %v103 = vld [vmem:[%s2 + $0x64] sm:$0xf]
    %v104 = vld [vmem:[%s2 + $0x68] sm:$0xf]
    %v105 = vld [vmem:[%s2 + $0x6c] sm:$0xf]
    %v106 = vld [vmem:[%s2 + $0x70] sm:$0xf]
    %v107 = vld [vmem:[%s2 + $0x74] sm:$0xf]
    %v108 = vld [vmem:[%s2 + $0x78] sm:$0xf]
    %v109 = vld [vmem:[%s2 + $0x7c] sm:$0xf]
    %v110 = vld [vmem:[%s2 + $0x80] sm:$0xf]
    %v111 = vld [vmem:[%s2 + $0x84] sm:$0xf]
    %v112 = vld [vmem:[%s2 + $0x88] sm:$0xf]
    %v113 = vld [vmem:[%s2 + $0x8c] sm:$0xf]
    %v114 = vld [vmem:[%s2 + $0x90] sm:$0xf]
    %v115 = vld [vmem:[%s2 + $0x94] sm:$0xf]
    %v116 = vld [vmem:[%s2 + $0x98] sm:$0xf]
    %v117 = vld [vmem:[%s2 + $0x9c] sm:$0xf]
    %v118 = vld [vmem:[%s2 + $0xa0] sm:$0xf]
    %v119 = vld [vmem:[%s2 + $0xa4] sm:$0xf]
    %v120 = vld [vmem:[%s2 + $0xa8] sm:$0xf]
    %v121 = vld [vmem:[%s2 + $0xac] sm:$0xf]
    %v122 = vld [vmem:[%s2 + $0xb0] sm:$0xf]
    %v123 = vld [vmem:[%s2 + $0xb4] sm:$0xf]
    %v124 = vld [vmem:[%s2 + $0xb8] sm:$0xf]
    %v125 = vld [vmem:[%s2 + $0xbc] sm:$0xf]
    %v126 = vld [vmem:[%s2 + $0xc0] sm:$0xf]
    %v127 = vld [vmem:[%s2 + $0xc4] sm:$0xf]
    %v128 = vld [vmem:[%s2 + $0xc8] sm:$0xf]
    %v129 = vld [vmem:[%s2 + $0xcc] sm:$0xf]
    %v130 = vld [vmem:[%s2 + $0xd0] sm:$0xf]
    %v131 = vld [vmem:[%s2 + $0xd4] sm:$0xf]
    %v132 = vld [vmem:[%s2 + $0xd8] sm:$0xf]
    %v133 = vld [vmem:[%s2 + $0xdc] sm:$0xf]
    %v134 = vld [vmem:[%s2 + $0xe0] sm:$0xf]
    %v135 = vld [vmem:[%s2 + $0xe4] sm:$0xf]
    %v136 = vld [vmem:[%s2 + $0xe8] sm:$0xf]
    %v137 = vld [vmem:[%s2 + $0xec] sm:$0xf]
    %v138 = vld [vmem:[%s2 + $0xf0] sm:$0xf]
    %v139 = vld [vmem:[%s2 + $0xf4] sm:$0xf]
    %v140 = vld [vmem:[%s2 + $0xf8] sm:$0xf]
    %v141 = vld [vmem:[%s2 + $0xfc] sm:$0xf]
    %v142 = vld [vmem:[%s2 + $0x100] sm:$0xf]
    %v143 = vld [vmem:[%s2 + $0x104] sm:$0xf]
    %v144 = vld [vmem:[%s2 + $0x108] sm:$0xf]
    %v145 = vld [vmem:[%s2 + $0x10c] sm:$0xf]
    %v146 = vld [vmem:[%s2 + $0x110] sm:$0xf]
    %v147 = vld [vmem:[%s2 + $0x114] sm:$0xf]
    %v148 = vld [vmem:[%s2 + $0x118] sm:$0xf]
    %v149 = vld [vmem:[%s2 + $0x11c] sm:$0xf]
    %v150 = vld [vmem:[%s2 + $0x120] sm:$0xf]
    %v151 = vld [vmem:[%s2 + $0x124] sm:$0xf]
    %v152 = vld [vmem:[%s2 + $0x128] sm:$0xf]
    %v153 = vld [vmem:[%s2 + $0x12c] sm:$0xf]
    %v154 = vld [vmem:[%s2 + $0x130] sm:$0xf]
    %v155 = vld [vmem:[%s2 + $0x134] sm:$0xf]
    %v156 = vld [vmem:[%s2 + $0x138] sm:$0xf]
    %v157 = vld [vmem:[%s2 + $0x13c] sm:$0xf]
    %v158 = vld [vmem:[%s2 + $0x140] sm:$0xf]
    %v159 = vld [vmem:[%s2 + $0x144] sm:$0xf]
    %v160 = vld [vmem:[%s2 + $0x148] sm:$0xf]
    %v161 = vld [vmem:[%s2 + $0x14c] sm:$0xf]
    %v162 = vld [vmem:[%s2 + $0x150] sm:$0xf]
    %v163 = vld [vmem:[%s2 + $0x154] sm:$0xf]
    %v164 = vld [vmem:[%s2 + $0x158] sm:$0xf]
    %v165 = vld [vmem:[%s2 + $0x15c] sm:$0xf]
    %v166 = vld [vmem:[%s2 + $0x160] sm:$0xf]
    %v167 = vld [vmem:[%s2 + $0x164] sm:$0xf]
    %v168 = vld [vmem:[%s2 + $0x168] sm:$0xf]
    %v169 = vld [vmem:[%s2 + $0x16c] sm:$0xf]
    %v170 = vld [vmem:[%s2 + $0x170] sm:$0xf]
    %v171 = vld [vmem:[%s2 + $0x174] sm:$0xf]
    %v172 = vld [vmem:[%s2 + $0x178] sm:$0xf]
    %v173 = vld [vmem:[%s2 + $0x17c] sm:$0xf]
    %v174 = vld [vmem:[%s2 + $0x180] sm:$0xf]
    %v175 = vld [vmem:[%s2 + $0x184] sm:$0xf]
    %v176 = vld [vmem:[%s2 + $0x188] sm:$0xf]
    %v177 = vld [vmem:[%s2 + $0x18c] sm:$0xf]
    %v178 = vld [vmem:[%s2 + $0x190] sm:$0xf]
    %v179 = vld [vmem:[%s2 + $0x194] sm:$0xf]
    %v180 = vld [vmem:[%s2 + $0x198] sm:$0xf]
    %v181 = vld [vmem:[%s2 + $0x19c] sm:$0xf]
    %v182 = vld [vmem:[%s2 + $0x1a0] sm:$0xf]
    %v183 = vld [vmem:[%s2 + $0x1a4] sm:$0xf]
    %v184 = vld [vmem:[%s2 + $0x1a8] sm:$0xf]
    %v185 = vld [vmem:[%s2 + $0x1ac] sm:$0xf]
    %v186 = vld [vmem:[%s2 + $0x1b0] sm:$0xf]
    %v187 = vld [vmem:[%s2 + $0x1b4] sm:$0xf]
    %v188 = vld [vmem:[%s2 + $0x1b8] sm:$0xf]
    %v189 = vld [vmem:[%s2 + $0x1bc] sm:$0xf]
    %v190 = vld [vmem:[%s2 + $0x1c0] sm:$0xf]
    %v191 = vld [vmem:[%s2 + $0x1c4] sm:$0xf]
    %v192 = vld [vmem:[%s2 + $0x1c8] sm:$0xf]
    %v193 = vld [vmem:[%s2 + $0x1cc] sm:$0xf]
    %v194 = vld [vmem:[%s2 + $0x1d0] sm:$0xf]
    %v195 = vld [vmem:[%s2 + $0x1d4] sm:$0xf]
    %v196 = vld [vmem:[%s2 + $0x1d8] sm:$0xf]
    %v197 = vld [vmem:[%s2 + $0x1dc] sm:$0xf]
    %v198 = vld [vmem:[%s2 + $0x1e0] sm:$0xf]
    %v199 = vld [vmem:[%s2 + $0x1e4] sm:$0xf]
    %v200 = vld [vmem:[%s2 + $0x1e8] sm:$0xf]
    %v201 = vld [vmem:[%s2 + $0x1ec] sm:$0xf]
    %v202 = vld [vmem:[%s2 + $0x1f0] sm:$0xf]
    %v203 = vld [vmem:[%s2 + $0x1f4] sm:$0xf]
    %v204 = vld [vmem:[%s2 + $0x1f8] sm:$0xf]
    %v205 = vld [vmem:[%s2 + $0x1fc] sm:$0xf]
    %v206 = vld [vmem:[%s2 + $0x200] sm:$0xf]
    %v207 = vld [vmem:[%s2 + $0x204] sm:$0xf]
    %v208 = vld [vmem:[%s2 + $0x208] sm:$0xf]
    %v209 = vld [vmem:[%s2 + $0x20c] sm:$0xf]
    %v210 = vld [vmem:[%s2 + $0x210] sm:$0xf]
    %v211 = vld [vmem:[%s2 + $0x214] sm:$0xf]
    %v212 = vld [vmem:[%s2 + $0x218] sm:$0xf]
    %v213 = vld [vmem:[%s2 + $0x21c] sm:$0xf]
    %v214 = vld [vmem:[%s2 + $0x220] sm:$0xf]
    %v215 = vld [vmem:[%s2 + $0x224] sm:$0xf]
    %v216 = vld [vmem:[%s2 + $0x228] sm:$0xf]
    %v217 = vld [vmem:[%s2 + $0x22c] sm:$0xf]
    %v218 = vld [vmem:[%s2 + $0x230] sm:$0xf]
    %v219 = vld [vmem:[%s2 + $0x234] sm:$0xf]
    %v220 = vld [vmem:[%s2 + $0x238] sm:$0xf]
    %v221 = vld [vmem:[%s2 + $0x23c] sm:$0xf]
    %v222 = vld [vmem:[%s2 + $0x240] sm:$0xf]
    %v223 = vld [vmem:[%s2 + $0x244] sm:$0xf]
    %v224 = vld [vmem:[%s2 + $0x248] sm:$0xf]
    %v225 = vld [vmem:[%s2 + $0x24c] sm:$0xf]
    %v226 = vld [vmem:[%s2 + $0x250] sm:$0xf]
    %v227 = vld [vmem:[%s2 + $0x254] sm:$0xf]
    %v228 = vld [vmem:[%s2 + $0x258] sm:$0xf]
    %v229 = vld [vmem:[%s2 + $0x25c] sm:$0xf]
    %v230 = vld [vmem:[%s2 + $0x260] sm:$0xf]
    %v231 = vld [vmem:[%s2 + $0x264] sm:$0xf]
    %v232 = vld [vmem:[%s2 + $0x268] sm:$0xf]
    %v233 = vld [vmem:[%s2 + $0x26c] sm:$0xf]
    %v234 = vld [vmem:[%s2 + $0x270] sm:$0xf]
    %v235 = vld [vmem:[%s2 + $0x274] sm:$0xf]
    %v236 = vld [vmem:[%s2 + $0x278] sm:$0xf]
    %v237 = vld [vmem:[%s2 + $0x27c] sm:$0xf]
    %v238 = vld [vmem:[%s2 + $0x280] sm:$0xf]
    %v239 = vld [vmem:[%s2 + $0x284] sm:$0xf]
    %v240 = vld [vmem:[%s2 + $0x288] sm:$0xf]
    %v241 = vld [vmem:[%s2 + $0x28c] sm:$0xf]
    %v242 = vld [vmem:[%s2 + $0x290] sm:$0xf]
    %v243 = vld [vmem:[%s2 + $0x294] sm:$0xf]
    %v244 = vld [vmem:[%s2 + $0x298] sm:$0xf]
    %v245 = vld [vmem:[%s2 + $0x29c] sm:$0xf]
    %v246 = vld [vmem:[%s2 + $0x2a0] sm:$0xf]
    %v247 = vld [vmem:[%s2 + $0x2a4] sm:$0xf]
    %v248 = vld [vmem:[%s2 + $0x2a8] sm:$0xf]
    %v249 = vld [vmem:[%s2 + $0x2ac] sm:$0xf]
    %v250 = vld [vmem:[%s2 + $0x2b0] sm:$0xf]
    %v251 = vld [vmem:[%s2 + $0x2b4] sm:$0xf]
    %v252 = vld [vmem:[%s2 + $0x2b8] sm:$0xf]
    %v253 = vld [vmem:[%s2 + $0x2bc] sm:$0xf]
    %v254 = vld [vmem:[%s2 + $0x2c0] sm:$0xf]
    %v255 = vld [vmem:[%s2 + $0x2c4] sm:$0xf]
    %v256 = vld [vmem:[%s2 + $0x2c8] sm:$0xf]
    %v257 = vld [vmem:[%s2 + $0x2cc] sm:$0xf]
    %v258 = vld [vmem:[%s2 + $0x2d0] sm:$0xf]
    %v259 = vld [vmem:[%s2 + $0x2d4] sm:$0xf]
    %v260 = vld [vmem:[%s2 + $0x2d8] sm:$0xf]
    %v261 = vld [vmem:[%s2 + $0x2dc] sm:$0xf]
    %v262 = vld [vmem:[%s2 + $0x2e0] sm:$0xf]
    %v263 = vld [vmem:[%s2 + $0x2e4] sm:$0xf]
    %v264 = vld [vmem:[%s2 + $0x2e8] sm:$0xf]
    %v265 = vld [vmem:[%s2 + $0x2ec] sm:$0xf]
    %v266 = vld [vmem:[%s2 + $0x2f0] sm:$0xf]
    %v267 = vld [vmem:[%s2 + $0x2f4] sm:$0xf]
    %v268 = vld [vmem:[%s2 + $0x2f8] sm:$0xf]
    %v269 = vld [vmem:[%s2 + $0x2fc] sm:$0xf]
    %v294 = vunpack.c.l.b16 %v54
    %v295 = vunpack.c.h.b16 %v54
    %v296 = vunpack.c.l.b16 %v55
    %v297 = vunpack.c.h.b16 %v55
    %v298 = vunpack.c.l.b16 %v56
    %v299 = vunpack.c.h.b16 %v56
    %v300 = vunpack.c.l.b16 %v57
    %v301 = vunpack.c.h.b16 %v57
    %v302 = vunpack.c.l.b16 %v58
    %v303 = vunpack.c.h.b16 %v58
    %v304 = vunpack.c.l.b16 %v59
    %v305 = vunpack.c.h.b16 %v59
    %v306 = vunpack.c.l.b16 %v60
    %v307 = vunpack.c.h.b16 %v60
    %v308 = vunpack.c.l.b16 %v61
    %v309 = vunpack.c.h.b16 %v61
    %v310 = vunpack.c.l.b16 %v62
    %v311 = vunpack.c.h.b16 %v62
    %v312 = vunpack.c.l.b16 %v63
    %v313 = vunpack.c.h.b16 %v63
    %v314 = vunpack.c.l.b16 %v64
    %v315 = vunpack.c.h.b16 %v64
    %v316 = vunpack.c.l.b16 %v65
    %v317 = vunpack.c.h.b16 %v65
    %v318 = vunpack.c.l.b16 %v66
    %v319 = vunpack.c.h.b16 %v66
    %v320 = vunpack.c.l.b16 %v67
    %v321 = vunpack.c.h.b16 %v67
    %v322 = vunpack.c.l.b16 %v68
    %v323 = vunpack.c.h.b16 %v68
    %v324 = vunpack.c.l.b16 %v69
    %v325 = vunpack.c.h.b16 %v69
    %v326 = vunpack.c.l.b16 %v70
    %v327 = vunpack.c.h.b16 %v70
    %v328 = vunpack.c.l.b16 %v71
    %v329 = vunpack.c.h.b16 %v71
    %v330 = vunpack.c.l.b16 %v72
    %v331 = vunpack.c.h.b16 %v72
    %v332 = vunpack.c.l.b16 %v73
    %v333 = vunpack.c.h.b16 %v73
    %v334 = vunpack.c.l.b16 %v74
    %v335 = vunpack.c.h.b16 %v74
    %v336 = vunpack.c.l.b16 %v75
    %v337 = vunpack.c.h.b16 %v75
    %v338 = vunpack.c.l.b16 %v76
    %v339 = vunpack.c.h.b16 %v76
    %v340 = vunpack.c.l.b16 %v77
    %v341 = vunpack.c.h.b16 %v77
    %v342 = vpack.c.b16 %v306, %v294
    %v343 = vpack.c.b16 %v307, %v295
    %v344 = vpack.c.b16 %v308, %v296
    %v345 = vpack.c.b16 %v309, %v297
    %v346 = vpack.c.b16 %v310, %v298
    %v347 = vpack.c.b16 %v311, %v299
    %v348 = vpack.c.b16 %v312, %v300
    %v349 = vpack.c.b16 %v313, %v301
    %v350 = vpack.c.b16 %v314, %v302
    %v351 = vpack.c.b16 %v315, %v303
    %v352 = vpack.c.b16 %v316, %v304
    %v353 = vpack.c.b16 %v317, %v305
    %v354 = vpack.c.b16 %v330, %v318
    %v355 = vpack.c.b16 %v331, %v319
    %v356 = vpack.c.b16 %v332, %v320
    %v357 = vpack.c.b16 %v333, %v321
    %v358 = vpack.c.b16 %v334, %v322
    %v359 = vpack.c.b16 %v335, %v323
    %v360 = vpack.c.b16 %v336, %v324
    %v361 = vpack.c.b16 %v337, %v325
    %v362 = vpack.c.b16 %v338, %v326
    %v363 = vpack.c.b16 %v339, %v327
    %v364 = vpack.c.b16 %v340, %v328
    %v365 = vpack.c.b16 %v341, %v329
    %v582 = vunpack.c.l.b16 %v78
    %v583 = vunpack.c.l.b16 %v79
    %v584 = vunpack.c.l.b16 %v80
    %v585 = vunpack.c.l.b16 %v81
    %v586 = vunpack.c.l.b16 %v82
    %v587 = vunpack.c.l.b16 %v83
    %v588 = vunpack.c.l.b16 %v84
    %v589 = vunpack.c.l.b16 %v85
    %v590 = vunpack.c.l.b16 %v86
    %v591 = vunpack.c.l.b16 %v87
    %v592 = vunpack.c.l.b16 %v88
    %v593 = vunpack.c.l.b16 %v89
    %v594 = vunpack.c.l.b16 %v90
    %v595 = vunpack.c.l.b16 %v91
    %v596 = vunpack.c.l.b16 %v92
    %v597 = vunpack.c.l.b16 %v93
    %v598 = vunpack.c.l.b16 %v94
    %v599 = vunpack.c.l.b16 %v95
    %v600 = vunpack.c.l.b16 %v96
    %v601 = vunpack.c.l.b16 %v97
    %v602 = vunpack.c.l.b16 %v98
    %v603 = vunpack.c.l.b16 %v99
    %v604 = vunpack.c.l.b16 %v100
    %v605 = vunpack.c.l.b16 %v101
    %v606 = vunpack.c.l.b16 %v102
    %v607 = vunpack.c.l.b16 %v103
    %v608 = vunpack.c.l.b16 %v104
    %v609 = vunpack.c.l.b16 %v105
    %v610 = vunpack.c.l.b16 %v106
    %v611 = vunpack.c.l.b16 %v107
    %v612 = vunpack.c.l.b16 %v108
    %v613 = vunpack.c.l.b16 %v109
    %v614 = vunpack.c.l.b16 %v110
    %v615 = vunpack.c.l.b16 %v111
    %v616 = vunpack.c.l.b16 %v112
    %v617 = vunpack.c.l.b16 %v113
    %v618 = vunpack.c.l.b16 %v114
    %v619 = vunpack.c.l.b16 %v115
    %v620 = vunpack.c.l.b16 %v116
    %v621 = vunpack.c.l.b16 %v117
    %v622 = vunpack.c.l.b16 %v118
    %v623 = vunpack.c.l.b16 %v119
    %v624 = vunpack.c.l.b16 %v120
    %v625 = vunpack.c.l.b16 %v121
    %v626 = vunpack.c.l.b16 %v122
    %v627 = vunpack.c.l.b16 %v123
    %v628 = vunpack.c.l.b16 %v124
    %v629 = vunpack.c.l.b16 %v125
    %v630 = vunpack.c.l.b16 %v126
    %v631 = vunpack.c.l.b16 %v127
    %v632 = vunpack.c.l.b16 %v128
    %v633 = vunpack.c.l.b16 %v129
    %v634 = vunpack.c.l.b16 %v130
    %v635 = vunpack.c.l.b16 %v131
    %v636 = vunpack.c.l.b16 %v132
    %v637 = vunpack.c.l.b16 %v133
    %v638 = vunpack.c.l.b16 %v134
    %v639 = vunpack.c.l.b16 %v135
    %v640 = vunpack.c.l.b16 %v136
    %v641 = vunpack.c.l.b16 %v137
    %v642 = vunpack.c.l.b16 %v138
    %v643 = vunpack.c.l.b16 %v139
    %v644 = vunpack.c.l.b16 %v140
    %v645 = vunpack.c.l.b16 %v141
    %v646 = vunpack.c.l.b16 %v142
    %v647 = vunpack.c.l.b16 %v143
    %v648 = vunpack.c.l.b16 %v144
    %v649 = vunpack.c.l.b16 %v145
    %v650 = vunpack.c.l.b16 %v146
    %v651 = vunpack.c.l.b16 %v147
    %v652 = vunpack.c.l.b16 %v148
    %v653 = vunpack.c.l.b16 %v149
    %v654 = vunpack.c.l.b16 %v150
    %v655 = vunpack.c.l.b16 %v151
    %v656 = vunpack.c.l.b16 %v152
    %v657 = vunpack.c.l.b16 %v153
    %v658 = vunpack.c.l.b16 %v154
    %v659 = vunpack.c.l.b16 %v155
    %v660 = vunpack.c.l.b16 %v156
    %v661 = vunpack.c.l.b16 %v157
    %v662 = vunpack.c.l.b16 %v158
    %v663 = vunpack.c.l.b16 %v159
    %v664 = vunpack.c.l.b16 %v160
    %v665 = vunpack.c.l.b16 %v161
    %v666 = vunpack.c.l.b16 %v162
    %v667 = vunpack.c.l.b16 %v163
    %v668 = vunpack.c.l.b16 %v164
    %v669 = vunpack.c.l.b16 %v165
    %v670 = vunpack.c.l.b16 %v166
    %v671 = vunpack.c.l.b16 %v167
    %v672 = vunpack.c.l.b16 %v168
    %v673 = vunpack.c.l.b16 %v169
    %v674 = vunpack.c.l.b16 %v170
    %v675 = vunpack.c.l.b16 %v171
    %v676 = vunpack.c.l.b16 %v172
    %v677 = vunpack.c.l.b16 %v173
    %v678 = vunpack.c.l.b16 %v174
    %v679 = vunpack.c.l.b16 %v175
    %v680 = vunpack.c.l.b16 %v176
    %v681 = vunpack.c.l.b16 %v177
    %v682 = vunpack.c.l.b16 %v178
    %v683 = vunpack.c.l.b16 %v179
    %v684 = vunpack.c.l.b16 %v180
    %v685 = vunpack.c.l.b16 %v181
    %v686 = vunpack.c.l.b16 %v182
    %v687 = vunpack.c.l.b16 %v183
    %v688 = vunpack.c.l.b16 %v184
    %v689 = vunpack.c.l.b16 %v185
    %v690 = vunpack.c.l.b16 %v186
    %v691 = vunpack.c.l.b16 %v187
    %v692 = vunpack.c.l.b16 %v188
    %v693 = vunpack.c.l.b16 %v189
    %v694 = vunpack.c.l.b16 %v190
    %v695 = vunpack.c.l.b16 %v191
    %v696 = vunpack.c.l.b16 %v192
    %v697 = vunpack.c.l.b16 %v193
    %v698 = vunpack.c.l.b16 %v194
    %v699 = vunpack.c.l.b16 %v195
    %v700 = vunpack.c.l.b16 %v196
    %v701 = vunpack.c.l.b16 %v197
    %v702 = vunpack.c.l.b16 %v198
    %v703 = vunpack.c.l.b16 %v199
    %v704 = vunpack.c.l.b16 %v200
    %v705 = vunpack.c.l.b16 %v201
    %v706 = vunpack.c.l.b16 %v202
    %v707 = vunpack.c.l.b16 %v203
    %v708 = vunpack.c.l.b16 %v204
    %v709 = vunpack.c.l.b16 %v205
    %v710 = vunpack.c.l.b16 %v206
    %v711 = vunpack.c.l.b16 %v207
    %v712 = vunpack.c.l.b16 %v208
    %v713 = vunpack.c.l.b16 %v209
    %v714 = vunpack.c.l.b16 %v210
    %v715 = vunpack.c.l.b16 %v211
    %v716 = vunpack.c.l.b16 %v212
    %v717 = vunpack.c.l.b16 %v213
    %v718 = vunpack.c.l.b16 %v214
    %v719 = vunpack.c.l.b16 %v215
    %v720 = vunpack.c.l.b16 %v216
    %v721 = vunpack.c.l.b16 %v217
    %v722 = vunpack.c.l.b16 %v218
    %v723 = vunpack.c.l.b16 %v219
    %v724 = vunpack.c.l.b16 %v220
    %v725 = vunpack.c.l.b16 %v221
    %v726 = vunpack.c.l.b16 %v222
    %v727 = vunpack.c.l.b16 %v223
    %v728 = vunpack.c.l.b16 %v224
    %v729 = vunpack.c.l.b16 %v225
    %v730 = vunpack.c.l.b16 %v226
    %v731 = vunpack.c.l.b16 %v227
    %v732 = vunpack.c.l.b16 %v228
    %v733 = vunpack.c.l.b16 %v229
    %v734 = vunpack.c.l.b16 %v230
    %v735 = vunpack.c.l.b16 %v231
    %v736 = vunpack.c.l.b16 %v232
    %v737 = vunpack.c.l.b16 %v233
    %v738 = vunpack.c.l.b16 %v234
    %v739 = vunpack.c.l.b16 %v235
    %v740 = vunpack.c.l.b16 %v236
    %v741 = vunpack.c.l.b16 %v237
    %v742 = vunpack.c.l.b16 %v238
    %v743 = vunpack.c.l.b16 %v239
    %v744 = vunpack.c.l.b16 %v240
    %v745 = vunpack.c.l.b16 %v241
    %v746 = vunpack.c.l.b16 %v242
    %v747 = vunpack.c.l.b16 %v243
    %v748 = vunpack.c.l.b16 %v244
    %v749 = vunpack.c.l.b16 %v245
    %v750 = vunpack.c.l.b16 %v246
    %v751 = vunpack.c.l.b16 %v247
    %v752 = vunpack.c.l.b16 %v248
    %v753 = vunpack.c.l.b16 %v249
    %v754 = vunpack.c.l.b16 %v250
    %v755 = vunpack.c.l.b16 %v251
    %v756 = vunpack.c.l.b16 %v252
    %v757 = vunpack.c.l.b16 %v253
    %v758 = vunpack.c.l.b16 %v254
    %v759 = vunpack.c.l.b16 %v255
    %v760 = vunpack.c.l.b16 %v256
    %v761 = vunpack.c.l.b16 %v257
    %v762 = vunpack.c.l.b16 %v258
    %v763 = vunpack.c.l.b16 %v259
    %v764 = vunpack.c.l.b16 %v260
    %v765 = vunpack.c.l.b16 %v261
    %v766 = vunpack.c.l.b16 %v262
    %v767 = vunpack.c.l.b16 %v263
    %v768 = vunpack.c.l.b16 %v264
    %v769 = vunpack.c.l.b16 %v265
    %v770 = vunpack.c.l.b16 %v266
    %v771 = vunpack.c.l.b16 %v267
    %v772 = vunpack.c.l.b16 %v268
    %v773 = vunpack.c.l.b16 %v269
    %v774 = vpack.c.b16 %v583, %v582
    %v775 = vpack.c.b16 %v585, %v584
    %v776 = vpack.c.b16 %v587, %v586
    %v777 = vpack.c.b16 %v589, %v588
    %v778 = vpack.c.b16 %v591, %v590
    %v779 = vpack.c.b16 %v593, %v592
    %v780 = vpack.c.b16 %v595, %v594
    %v781 = vpack.c.b16 %v597, %v596
    %v782 = vpack.c.b16 %v599, %v598
    %v783 = vpack.c.b16 %v601, %v600
    %v784 = vpack.c.b16 %v603, %v602
    %v785 = vpack.c.b16 %v605, %v604
    %v786 = vpack.c.b16 %v607, %v606
    %v787 = vpack.c.b16 %v609, %v608
    %v788 = vpack.c.b16 %v611, %v610
    %v789 = vpack.c.b16 %v613, %v612
    %v790 = vpack.c.b16 %v615, %v614
    %v791 = vpack.c.b16 %v617, %v616
    %v792 = vpack.c.b16 %v619, %v618
    %v793 = vpack.c.b16 %v621, %v620
    %v794 = vpack.c.b16 %v623, %v622
    %v795 = vpack.c.b16 %v625, %v624
    %v796 = vpack.c.b16 %v627, %v626
    %v797 = vpack.c.b16 %v629, %v628
    %v798 = vpack.c.b16 %v631, %v630
    %v799 = vpack.c.b16 %v633, %v632
    %v800 = vpack.c.b16 %v635, %v634
    %v801 = vpack.c.b16 %v637, %v636
    %v802 = vpack.c.b16 %v639, %v638
    %v803 = vpack.c.b16 %v641, %v640
    %v804 = vpack.c.b16 %v643, %v642
    %v805 = vpack.c.b16 %v645, %v644
    %v806 = vpack.c.b16 %v647, %v646
    %v807 = vpack.c.b16 %v649, %v648
    %v808 = vpack.c.b16 %v651, %v650
    %v809 = vpack.c.b16 %v653, %v652
    %v810 = vpack.c.b16 %v655, %v654
    %v811 = vpack.c.b16 %v657, %v656
    %v812 = vpack.c.b16 %v659, %v658
    %v813 = vpack.c.b16 %v661, %v660
    %v814 = vpack.c.b16 %v663, %v662
    %v815 = vpack.c.b16 %v665, %v664
    %v816 = vpack.c.b16 %v667, %v666
    %v817 = vpack.c.b16 %v669, %v668
    %v818 = vpack.c.b16 %v671, %v670
    %v819 = vpack.c.b16 %v673, %v672
    %v820 = vpack.c.b16 %v675, %v674
    %v821 = vpack.c.b16 %v677, %v676
    %v822 = vpack.c.b16 %v679, %v678
    %v823 = vpack.c.b16 %v681, %v680
    %v824 = vpack.c.b16 %v683, %v682
    %v825 = vpack.c.b16 %v685, %v684
    %v826 = vpack.c.b16 %v687, %v686
    %v827 = vpack.c.b16 %v689, %v688
    %v828 = vpack.c.b16 %v691, %v690
    %v829 = vpack.c.b16 %v693, %v692
    %v830 = vpack.c.b16 %v695, %v694
    %v831 = vpack.c.b16 %v697, %v696
    %v832 = vpack.c.b16 %v699, %v698
    %v833 = vpack.c.b16 %v701, %v700
    %v834 = vpack.c.b16 %v703, %v702
    %v835 = vpack.c.b16 %v705, %v704
    %v836 = vpack.c.b16 %v707, %v706
    %v837 = vpack.c.b16 %v709, %v708
    %v838 = vpack.c.b16 %v711, %v710
    %v839 = vpack.c.b16 %v713, %v712
    %v840 = vpack.c.b16 %v715, %v714
    %v841 = vpack.c.b16 %v717, %v716
    %v842 = vpack.c.b16 %v719, %v718
    %v843 = vpack.c.b16 %v721, %v720
    %v844 = vpack.c.b16 %v723, %v722
    %v845 = vpack.c.b16 %v725, %v724
    %v846 = vpack.c.b16 %v727, %v726
    %v847 = vpack.c.b16 %v729, %v728
    %v848 = vpack.c.b16 %v731, %v730
    %v849 = vpack.c.b16 %v733, %v732
    %v850 = vpack.c.b16 %v735, %v734
    %v851 = vpack.c.b16 %v737, %v736
    %v852 = vpack.c.b16 %v739, %v738
    %v853 = vpack.c.b16 %v741, %v740
    %v854 = vpack.c.b16 %v743, %v742
    %v855 = vpack.c.b16 %v745, %v744
    %v856 = vpack.c.b16 %v747, %v746
    %v857 = vpack.c.b16 %v749, %v748
    %v858 = vpack.c.b16 %v751, %v750
    %v859 = vpack.c.b16 %v753, %v752
    %v860 = vpack.c.b16 %v755, %v754
    %v861 = vpack.c.b16 %v757, %v756
    %v862 = vpack.c.b16 %v759, %v758
    %v863 = vpack.c.b16 %v761, %v760
    %v864 = vpack.c.b16 %v763, %v762
    %v865 = vpack.c.b16 %v765, %v764
    %v866 = vpack.c.b16 %v767, %v766
    %v867 = vpack.c.b16 %v769, %v768
    %v868 = vpack.c.b16 %v771, %v770
    %v869 = vpack.c.b16 %v773, %v772
    %966 = vmatprep.subr.bf16.mxu0 0
    %967 = vmatpush1.bf16.msra.mxu0 %v781
    %968 = vmatprep.subr.bf16.mxu0 0
    %969 = vmatpush1.bf16.msra.mxu0 %v780
    %970 = vmatprep.subr.bf16.mxu0 0
    %971 = vmatpush1.bf16.msra.mxu0 %v779
    %972 = vmatprep.subr.bf16.mxu0 0
    %973 = vmatpush1.bf16.msra.mxu0 %v778
    %974 = vmatprep.subr.bf16.mxu0 0
    %975 = vmatpush1.bf16.msra.mxu0 %v777
    %976 = vmatprep.subr.bf16.mxu0 0
    %977 = vmatpush1.bf16.msra.mxu0 %v776
    %978 = vmatprep.subr.bf16.mxu0 0
    %979 = vmatpush1.bf16.msra.mxu0 %v775
    %980 = vmatprep.subr.bf16.mxu0 0
    %981 = vmatpush1.bf16.msra.mxu0 %v774
    %982 = vmatprep.subr.bf16.mxu0 0
    %983 = vmatpush2.bf16.msra.mxu0 %v789
    %984 = vmatprep.subr.bf16.mxu0 0
    %985 = vmatpush2.bf16.msra.mxu0 %v788
    %986 = vmatprep.subr.bf16.mxu0 0
    %987 = vmatpush2.bf16.msra.mxu0 %v787
    %988 = vmatprep.subr.bf16.mxu0 0
    %989 = vmatpush2.bf16.msra.mxu0 %v786
    %990 = vmatprep.subr.bf16.mxu0 0
    %991 = vmatpush2.bf16.msra.mxu0 %v785
    %992 = vmatprep.subr.bf16.mxu0 0
    %993 = vmatpush2.bf16.msra.mxu0 %v784
    %994 = vmatprep.subr.bf16.mxu0 0
    %995 = vmatpush2.bf16.msra.mxu0 %v783
    %996 = vmatprep.subr.bf16.mxu0 0
    %997 = vmatpush2.bf16.msra.mxu0 %v782
    %998 = vmatprep.mubr.bf16.mxu0 %v343
    %999 = vmatmul.mubr.bf16.gmra.mxu0 %v342
    %v1000 = vpop.f32.mrf.mxu0
    %v1001 = vadd.f32 0.0, %v1000
    %v1002 = vpop.f32.mrf.mxu0
    %v1003 = vpop.f32.mrf.mxu0
    %v1004 = vadd.f32 0.0, %v1003
    %v1005 = vpop.f32.mrf.mxu0
    %1006 = vmatprep.mubr.bf16.mxu0 %v355
    %1007 = vmatmul.mubr.bf16.gmra.mxu0 %v354
    %v1008 = vpop.f32.mrf.mxu0
    %v1009 = vadd.f32 0.0, %v1008
    %v1010 = vpop.f32.mrf.mxu0
    %v1011 = vpop.f32.mrf.mxu0
    %v1012 = vadd.f32 0.0, %v1011
    %v1013 = vpop.f32.mrf.mxu0
    %1014 = vdwg.mxu0
    %1015 = vmatprep.subr.bf16.mxu0 0
    %1016 = vmatpush1.bf16.msra.mxu0 %v797
    %1017 = vmatprep.subr.bf16.mxu0 0
    %1018 = vmatpush1.bf16.msra.mxu0 %v796
    %1019 = vmatprep.subr.bf16.mxu0 0
    %1020 = vmatpush1.bf16.msra.mxu0 %v795
    %1021 = vmatprep.subr.bf16.mxu0 0
    %1022 = vmatpush1.bf16.msra.mxu0 %v794
    %1023 = vmatprep.subr.bf16.mxu0 0
    %1024 = vmatpush1.bf16.msra.mxu0 %v793
    %1025 = vmatprep.subr.bf16.mxu0 0
    %1026 = vmatpush1.bf16.msra.mxu0 %v792
    %1027 = vmatprep.subr.bf16.mxu0 0
    %1028 = vmatpush1.bf16.msra.mxu0 %v791
    %1029 = vmatprep.subr.bf16.mxu0 0
    %1030 = vmatpush1.bf16.msra.mxu0 %v790
    %1031 = vmatprep.subr.bf16.mxu0 0
    %1032 = vmatpush2.bf16.msra.mxu0 %v805
    %1033 = vmatprep.subr.bf16.mxu0 0
    %1034 = vmatpush2.bf16.msra.mxu0 %v804
    %1035 = vmatprep.subr.bf16.mxu0 0
    %1036 = vmatpush2.bf16.msra.mxu0 %v803
    %1037 = vmatprep.subr.bf16.mxu0 0
    %1038 = vmatpush2.bf16.msra.mxu0 %v802
    %1039 = vmatprep.subr.bf16.mxu0 0
    %1040 = vmatpush2.bf16.msra.mxu0 %v801
    %1041 = vmatprep.subr.bf16.mxu0 0
    %1042 = vmatpush2.bf16.msra.mxu0 %v800
    %1043 = vmatprep.subr.bf16.mxu0 0
    %1044 = vmatpush2.bf16.msra.mxu0 %v799
    %1045 = vmatprep.subr.bf16.mxu0 0
    %1046 = vmatpush2.bf16.msra.mxu0 %v798
    %1047 = vmatprep.mubr.bf16.mxu0 %v345
    %1048 = vmatmul.mubr.bf16.gmra.mxu0 %v344
    %v1049 = vpop.f32.mrf.mxu0
    %v1050 = vadd.f32 %v1001, %v1049
    %v1051 = vpop.f32.mrf.mxu0
    %v1052 = vpop.f32.mrf.mxu0
    %v1053 = vadd.f32 %v1004, %v1052
    %v1054 = vpop.f32.mrf.mxu0
    %1055 = vmatprep.mubr.bf16.mxu0 %v357
    %1056 = vmatmul.mubr.bf16.gmra.mxu0 %v356
    %v1057 = vpop.f32.mrf.mxu0
    %v1058 = vadd.f32 %v1009, %v1057
    %v1059 = vpop.f32.mrf.mxu0
    %v1060 = vpop.f32.mrf.mxu0
    %v1061 = vadd.f32 %v1012, %v1060
    %v1062 = vpop.f32.mrf.mxu0
    %1063 = vdwg.mxu0
    %1064 = vmatprep.subr.bf16.mxu0 0
    %1065 = vmatpush1.bf16.msra.mxu0 %v813
    %1066 = vmatprep.subr.bf16.mxu0 0
    %1067 = vmatpush1.bf16.msra.mxu0 %v812
    %1068 = vmatprep.subr.bf16.mxu0 0
    %1069 = vmatpush1.bf16.msra.mxu0 %v811
    %1070 = vmatprep.subr.bf16.mxu0 0
    %1071 = vmatpush1.bf16.msra.mxu0 %v810
    %1072 = vmatprep.subr.bf16.mxu0 0
    %1073 = vmatpush1.bf16.msra.mxu0 %v809
    %1074 = vmatprep.subr.bf16.mxu0 0
    %1075 = vmatpush1.bf16.msra.mxu0 %v808
    %1076 = vmatprep.subr.bf16.mxu0 0
    %1077 = vmatpush1.bf16.msra.mxu0 %v807
    %1078 = vmatprep.subr.bf16.mxu0 0
    %1079 = vmatpush1.bf16.msra.mxu0 %v806
    %1080 = vmatprep.subr.bf16.mxu0 0
    %1081 = vmatpush2.bf16.msra.mxu0 %v821
    %1082 = vmatprep.subr.bf16.mxu0 0
    %1083 = vmatpush2.bf16.msra.mxu0 %v820
    %1084 = vmatprep.subr.bf16.mxu0 0
    %1085 = vmatpush2.bf16.msra.mxu0 %v819
    %1086 = vmatprep.subr.bf16.mxu0 0
    %1087 = vmatpush2.bf16.msra.mxu0 %v818
    %1088 = vmatprep.subr.bf16.mxu0 0
    %1089 = vmatpush2.bf16.msra.mxu0 %v817
    %1090 = vmatprep.subr.bf16.mxu0 0
    %1091 = vmatpush2.bf16.msra.mxu0 %v816
    %1092 = vmatprep.subr.bf16.mxu0 0
    %1093 = vmatpush2.bf16.msra.mxu0 %v815
    %1094 = vmatprep.subr.bf16.mxu0 0
    %1095 = vmatpush2.bf16.msra.mxu0 %v814
    %1096 = vmatprep.mubr.bf16.mxu0 %v347
    %1097 = vmatmul.mubr.bf16.gmra.mxu0 %v346
    %v1098 = vpop.f32.mrf.mxu0
    %v1099 = vadd.f32 %v1050, %v1098
    %v1100 = vpop.f32.mrf.mxu0
    %v1101 = vpop.f32.mrf.mxu0
    %v1102 = vadd.f32 %v1053, %v1101
    %v1103 = vpop.f32.mrf.mxu0
    %1104 = vmatprep.mubr.bf16.mxu0 %v359
    %1105 = vmatmul.mubr.bf16.gmra.mxu0 %v358
    %v1106 = vpop.f32.mrf.mxu0
    %v1107 = vadd.f32 %v1058, %v1106
    %v1108 = vpop.f32.mrf.mxu0
    %v1109 = vpop.f32.mrf.mxu0
    %v1110 = vadd.f32 %v1061, %v1109
    %v1111 = vpop.f32.mrf.mxu0
    %1112 = vdwg.mxu0
    %1113 = vmatprep.subr.bf16.mxu0 0
    %1114 = vmatpush1.bf16.msra.mxu0 %v829
    %1115 = vmatprep.subr.bf16.mxu0 0
    %1116 = vmatpush1.bf16.msra.mxu0 %v828
    %1117 = vmatprep.subr.bf16.mxu0 0
    %1118 = vmatpush1.bf16.msra.mxu0 %v827
    %1119 = vmatprep.subr.bf16.mxu0 0
    %1120 = vmatpush1.bf16.msra.mxu0 %v826
    %1121 = vmatprep.subr.bf16.mxu0 0
    %1122 = vmatpush1.bf16.msra.mxu0 %v825
    %1123 = vmatprep.subr.bf16.mxu0 0
    %1124 = vmatpush1.bf16.msra.mxu0 %v824
    %1125 = vmatprep.subr.bf16.mxu0 0
    %1126 = vmatpush1.bf16.msra.mxu0 %v823
    %1127 = vmatprep.subr.bf16.mxu0 0
    %1128 = vmatpush1.bf16.msra.mxu0 %v822
    %1129 = vmatprep.subr.bf16.mxu0 0
    %1130 = vmatpush2.bf16.msra.mxu0 %v837
    %1131 = vmatprep.subr.bf16.mxu0 0
    %1132 = vmatpush2.bf16.msra.mxu0 %v836
    %1133 = vmatprep.subr.bf16.mxu0 0
    %1134 = vmatpush2.bf16.msra.mxu0 %v835
    %1135 = vmatprep.subr.bf16.mxu0 0
    %1136 = vmatpush2.bf16.msra.mxu0 %v834
    %1137 = vmatprep.subr.bf16.mxu0 0
    %1138 = vmatpush2.bf16.msra.mxu0 %v833
    %1139 = vmatprep.subr.bf16.mxu0 0
    %1140 = vmatpush2.bf16.msra.mxu0 %v832
    %1141 = vmatprep.subr.bf16.mxu0 0
    %1142 = vmatpush2.bf16.msra.mxu0 %v831
    %1143 = vmatprep.subr.bf16.mxu0 0
    %1144 = vmatpush2.bf16.msra.mxu0 %v830
    %1145 = vmatprep.mubr.bf16.mxu0 %v349
    %1146 = vmatmul.mubr.bf16.gmra.mxu0 %v348
    %v1147 = vpop.f32.mrf.mxu0
    %v1148 = vadd.f32 %v1099, %v1147
    %v1149 = vpop.f32.mrf.mxu0
    %v1150 = vpop.f32.mrf.mxu0
    %v1151 = vadd.f32 %v1102, %v1150
    %v1152 = vpop.f32.mrf.mxu0
    %1153 = vmatprep.mubr.bf16.mxu0 %v361
    %1154 = vmatmul.mubr.bf16.gmra.mxu0 %v360
    %v1155 = vpop.f32.mrf.mxu0
    %v1156 = vadd.f32 %v1107, %v1155
    %v1157 = vpop.f32.mrf.mxu0
    %v1158 = vpop.f32.mrf.mxu0
    %v1159 = vadd.f32 %v1110, %v1158
    %v1160 = vpop.f32.mrf.mxu0
    %1161 = vdwg.mxu0
    %1162 = vmatprep.subr.bf16.mxu0 0
    %1163 = vmatpush1.bf16.msra.mxu0 %v845
    %1164 = vmatprep.subr.bf16.mxu0 0
    %1165 = vmatpush1.bf16.msra.mxu0 %v844
    %1166 = vmatprep.subr.bf16.mxu0 0
    %1167 = vmatpush1.bf16.msra.mxu0 %v843
    %1168 = vmatprep.subr.bf16.mxu0 0
    %1169 = vmatpush1.bf16.msra.mxu0 %v842
    %1170 = vmatprep.subr.bf16.mxu0 0
    %1171 = vmatpush1.bf16.msra.mxu0 %v841
    %1172 = vmatprep.subr.bf16.mxu0 0
    %1173 = vmatpush1.bf16.msra.mxu0 %v840
    %1174 = vmatprep.subr.bf16.mxu0 0
    %1175 = vmatpush1.bf16.msra.mxu0 %v839
    %1176 = vmatprep.subr.bf16.mxu0 0
    %1177 = vmatpush1.bf16.msra.mxu0 %v838
    %1178 = vmatprep.subr.bf16.mxu0 0
    %1179 = vmatpush2.bf16.msra.mxu0 %v853
    %1180 = vmatprep.subr.bf16.mxu0 0
    %1181 = vmatpush2.bf16.msra.mxu0 %v852
    %1182 = vmatprep.subr.bf16.mxu0 0
    %1183 = vmatpush2.bf16.msra.mxu0 %v851
    %1184 = vmatprep.subr.bf16.mxu0 0
    %1185 = vmatpush2.bf16.msra.mxu0 %v850
    %1186 = vmatprep.subr.bf16.mxu0 0
    %1187 = vmatpush2.bf16.msra.mxu0 %v849
    %1188 = vmatprep.subr.bf16.mxu0 0
    %1189 = vmatpush2.bf16.msra.mxu0 %v848
    %1190 = vmatprep.subr.bf16.mxu0 0
    %1191 = vmatpush2.bf16.msra.mxu0 %v847
    %1192 = vmatprep.subr.bf16.mxu0 0
    %1193 = vmatpush2.bf16.msra.mxu0 %v846
    %1194 = vmatprep.mubr.bf16.mxu0 %v351
    %1195 = vmatmul.mubr.bf16.gmra.mxu0 %v350
    %v1196 = vpop.f32.mrf.mxu0
    %v1197 = vadd.f32 %v1148, %v1196
    %v1198 = vpop.f32.mrf.mxu0
    %v1199 = vpop.f32.mrf.mxu0
    %v1200 = vadd.f32 %v1151, %v1199
    %v1201 = vpop.f32.mrf.mxu0
    %1202 = vmatprep.mubr.bf16.mxu0 %v363
    %1203 = vmatmul.mubr.bf16.gmra.mxu0 %v362
    %v1204 = vpop.f32.mrf.mxu0
    %v1205 = vadd.f32 %v1156, %v1204
    %v1206 = vpop.f32.mrf.mxu0
    %v1207 = vpop.f32.mrf.mxu0
    %v1208 = vadd.f32 %v1159, %v1207
    %v1209 = vpop.f32.mrf.mxu0
    %1210 = vdwg.mxu0
    %1211 = vmatprep.subr.bf16.mxu0 0
    %1212 = vmatpush1.bf16.msra.mxu0 %v861
    %1213 = vmatprep.subr.bf16.mxu0 0
    %1214 = vmatpush1.bf16.msra.mxu0 %v860
    %1215 = vmatprep.subr.bf16.mxu0 0
    %1216 = vmatpush1.bf16.msra.mxu0 %v859
    %1217 = vmatprep.subr.bf16.mxu0 0
    %1218 = vmatpush1.bf16.msra.mxu0 %v858
    %1219 = vmatprep.subr.bf16.mxu0 0
    %1220 = vmatpush1.bf16.msra.mxu0 %v857
    %1221 = vmatprep.subr.bf16.mxu0 0
    %1222 = vmatpush1.bf16.msra.mxu0 %v856
    %1223 = vmatprep.subr.bf16.mxu0 0
    %1224 = vmatpush1.bf16.msra.mxu0 %v855
    %1225 = vmatprep.subr.bf16.mxu0 0
    %1226 = vmatpush1.bf16.msra.mxu0 %v854
    %1227 = vmatprep.subr.bf16.mxu0 0
    %1228 = vmatpush2.bf16.msra.mxu0 %v869
    %1229 = vmatprep.subr.bf16.mxu0 0
    %1230 = vmatpush2.bf16.msra.mxu0 %v868
    %1231 = vmatprep.subr.bf16.mxu0 0
    %1232 = vmatpush2.bf16.msra.mxu0 %v867
    %1233 = vmatprep.subr.bf16.mxu0 0
    %1234 = vmatpush2.bf16.msra.mxu0 %v866
    %1235 = vmatprep.subr.bf16.mxu0 0
    %1236 = vmatpush2.bf16.msra.mxu0 %v865
    %1237 = vmatprep.subr.bf16.mxu0 0
    %1238 = vmatpush2.bf16.msra.mxu0 %v864
    %1239 = vmatprep.subr.bf16.mxu0 0
    %1240 = vmatpush2.bf16.msra.mxu0 %v863
    %1241 = vmatprep.subr.bf16.mxu0 0
    %1242 = vmatpush2.bf16.msra.mxu0 %v862
    %1243 = vmatprep.mubr.bf16.mxu0 %v353
    %1244 = vmatmul.mubr.bf16.gmra.mxu0 %v352
    %v1245 = vpop.f32.mrf.mxu0
    %v1246 = vadd.f32 %v1197, %v1245
    %v1247 = vpop.f32.mrf.mxu0
    %v1248 = vpop.f32.mrf.mxu0
    %v1249 = vadd.f32 %v1200, %v1248
    %v1250 = vpop.f32.mrf.mxu0
    %1251 = vmatprep.mubr.bf16.mxu0 %v365
    %1252 = vmatmul.mubr.bf16.gmra.mxu0 %v364
    %v1253 = vpop.f32.mrf.mxu0
    %v1254 = vadd.f32 %v1205, %v1253
    %v1255 = vpop.f32.mrf.mxu0
    %v1256 = vpop.f32.mrf.mxu0
    %v1257 = vadd.f32 %v1208, %v1256
    %v1258 = vpop.f32.mrf.mxu0
    %1259 = vdwg.mxu0
    %v1260 = vld [vmem:[%s3] sm:$0x1]
    %v1262 = vlaneseq
    %v1263 = vshrl.u32 %v1262, 7
    %v1264 = vsub.s32 0, %v1263
    %v1265 = vrot.slane %v1260, %v1264
    %vm1267 = vcmask 261120
    %v1269 = vsel %vm1267, %v50, 0
    %v1272 = vsel %vm1267, %v51, 0
    %v1275 = vsel %vm1267, %v52, 0
    %v1278 = vsel %vm1267, %v53, 0
    %1280 = vmatprep.subr.mxu0 0.0
    %1281 = vmatpush1.msra.mxu0 0.0
    %1282 = vmatprep.subr.mxu0 0.0
    %1283 = vmatpush1.msra.mxu0 0.0
    %1284 = vmatprep.subr.mxu0 0.0
    %1285 = vmatpush1.msra.mxu0 0.0
    %1286 = vmatprep.subr.mxu0 0.0
    %1287 = vmatpush1.msra.mxu0 0.0
    %1288 = vmatprep.subr.mxu0 0.0
    %1289 = vmatpush1.msra.mxu0 0.0
    %1290 = vmatprep.subr.mxu0 0.0
    %1291 = vmatpush1.msra.mxu0 0.0
    %1292 = vmatprep.subr.mxu0 0.0
    %1293 = vmatpush1.msra.mxu0 0.0
    %1294 = vmatprep.subr.mxu0 0.0
    %1295 = vmatpush1.msra.mxu0 0.0
    %1296 = vmatprep.subr.mxu0 0.0
    %1297 = vmatpush1.msra.mxu0 0.0
    %1298 = vmatprep.subr.mxu0 0.0
    %1299 = vmatpush1.msra.mxu0 0.0
    %1300 = vmatprep.subr.mxu0 0.0
    %1301 = vmatpush1.msra.mxu0 0.0
    %1302 = vmatprep.subr.mxu0 0.0
    %1303 = vmatpush1.msra.mxu0 0.0
    %1304 = vmatprep.subr.mxu0 0.0
    %1305 = vmatpush1.msra.mxu0 %v1257
    %1306 = vmatprep.subr.mxu0 0.0
    %1307 = vmatpush1.msra.mxu0 %v1254
    %1308 = vmatprep.subr.mxu0 0.0
    %1309 = vmatpush1.msra.mxu0 %v1249
    %1310 = vmatprep.subr.mxu0 0.0
    %1311 = vmatpush1.msra.mxu0 %v1246
    %1312 = vmatprep.subr.mxu0 0.0
    %1313 = vmatpush2.msra.mxu0 0.0
    %1314 = vmatprep.subr.mxu0 0.0
    %1315 = vmatpush2.msra.mxu0 0.0
    %1316 = vmatprep.subr.mxu0 0.0
    %1317 = vmatpush2.msra.mxu0 0.0
    %1318 = vmatprep.subr.mxu0 0.0
    %1319 = vmatpush2.msra.mxu0 0.0
    %1320 = vmatprep.subr.mxu0 0.0
    %1321 = vmatpush2.msra.mxu0 0.0
    %1322 = vmatprep.subr.mxu0 0.0
    %1323 = vmatpush2.msra.mxu0 0.0
    %1324 = vmatprep.subr.mxu0 0.0
    %1325 = vmatpush2.msra.mxu0 0.0
    %1326 = vmatprep.subr.mxu0 0.0
    %1327 = vmatpush2.msra.mxu0 0.0
    %1328 = vmatprep.subr.mxu0 0.0
    %1329 = vmatpush2.msra.mxu0 0.0
    %1330 = vmatprep.subr.mxu0 0.0
    %1331 = vmatpush2.msra.mxu0 0.0
    %1332 = vmatprep.subr.mxu0 0.0
    %1333 = vmatpush2.msra.mxu0 0.0
    %1334 = vmatprep.subr.mxu0 0.0
    %1335 = vmatpush2.msra.mxu0 0.0
    %1336 = vmatprep.subr.mxu0 0.0
    %1337 = vmatpush2.msra.mxu0 0.0
    %1338 = vmatprep.subr.mxu0 0.0
    %1339 = vmatpush2.msra.mxu0 0.0
    %1340 = vmatprep.subr.mxu0 0.0
    %1341 = vmatpush2.msra.mxu0 0.0
    %1342 = vmatprep.subr.mxu0 0.0
    %1343 = vmatpush2.msra.mxu0 0.0
    %1344 = vmatprep.mubr.f32.mxu0 0.0
    %1345 = vmatmul.mubr.f32.gmra.mxu0 %v1269
    %v1346 = vpop.f32.mrf.mxu0
    %v1347 = vadd.f32 %v1265, %v1346
    %v1348 = vpop.f32.mrf.mxu0
    %1349 = vmatprep.mubr.f32.mxu0 0.0
    %1350 = vmatmul.mubr.f32.gmra.mxu0 %v1272
    %v1351 = vpop.f32.mrf.mxu0
    %v1352 = vadd.f32 %v1265, %v1351
    %v1353 = vpop.f32.mrf.mxu0
    %1354 = vmatprep.mubr.f32.mxu0 0.0
    %1355 = vmatmul.mubr.f32.gmra.mxu0 %v1275
    %v1356 = vpop.f32.mrf.mxu0
    %v1357 = vadd.f32 %v1265, %v1356
    %v1358 = vpop.f32.mrf.mxu0
    %1359 = vmatprep.mubr.f32.mxu0 0.0
    %1360 = vmatmul.mubr.f32.gmra.mxu0 %v1278
    %v1361 = vpop.f32.mrf.mxu0
    %v1362 = vadd.f32 %v1265, %v1361
    %v1363 = vpop.f32.mrf.mxu0
    %1364 = vdwg.mxu0
    %v1365 = vmax.f32 %v1347, 0.0
    %v1366 = vmax.f32 %v1352, 0.0
    %v1367 = vmax.f32 %v1357, 0.0
    %v1368 = vmax.f32 %v1362, 0.0
    %v1369 = vpack.c.bf16 %v1366, %v1365
    %v1370 = vpack.c.bf16 %v1368, %v1367
    %v1371 = vld [vmem:[%s4] sm:$0xf]
    %v1372 = vld [vmem:[%s4 + $0x4] sm:$0xf]
    %v1373 = vld [vmem:[%s4 + $0x8] sm:$0xf]
    %v1374 = vld [vmem:[%s4 + $0xc] sm:$0xf]
    %v1375 = vld [vmem:[%s4 + $0x10] sm:$0xf]
    %v1376 = vld [vmem:[%s4 + $0x14] sm:$0xf]
    %v1377 = vld [vmem:[%s4 + $0x18] sm:$0xf]
    %v1378 = vld [vmem:[%s4 + $0x1c] sm:$0xf]
    %v1379 = vld [vmem:[%s4 + $0x20] sm:$0xf]
    %v1380 = vld [vmem:[%s4 + $0x24] sm:$0xf]
    %v1381 = vld [vmem:[%s4 + $0x28] sm:$0xf]
    %v1382 = vld [vmem:[%s4 + $0x2c] sm:$0xf]
    %v1383 = vld [vmem:[%s4 + $0x30] sm:$0xf]
    %v1384 = vld [vmem:[%s4 + $0x34] sm:$0xf]
    %v1385 = vld [vmem:[%s4 + $0x38] sm:$0xf]
    %v1386 = vld [vmem:[%s4 + $0x3c] sm:$0xf]
    %v1403 = vunpack.c.l.b16 %v1371
    %v1404 = vunpack.c.l.b16 %v1372
    %v1405 = vunpack.c.l.b16 %v1373
    %v1406 = vunpack.c.l.b16 %v1374
    %v1407 = vunpack.c.l.b16 %v1375
    %v1408 = vunpack.c.l.b16 %v1376
    %v1409 = vunpack.c.l.b16 %v1377
    %v1410 = vunpack.c.l.b16 %v1378
    %v1411 = vunpack.c.l.b16 %v1379
    %v1412 = vunpack.c.l.b16 %v1380
    %v1413 = vunpack.c.l.b16 %v1381
    %v1414 = vunpack.c.l.b16 %v1382
    %v1415 = vunpack.c.l.b16 %v1383
    %v1416 = vunpack.c.l.b16 %v1384
    %v1417 = vunpack.c.l.b16 %v1385
    %v1418 = vunpack.c.l.b16 %v1386
    %v1419 = vpack.c.b16 %v1404, %v1403
    %v1420 = vpack.c.b16 %v1406, %v1405
    %v1421 = vpack.c.b16 %v1408, %v1407
    %v1422 = vpack.c.b16 %v1410, %v1409
    %v1423 = vpack.c.b16 %v1412, %v1411
    %v1424 = vpack.c.b16 %v1414, %v1413
    %v1425 = vpack.c.b16 %v1416, %v1415
    %v1426 = vpack.c.b16 %v1418, %v1417
    %1435 = vmatprep.subr.bf16.mxu0 0
    %1436 = vmatpush1.bf16.msra.mxu0 %v1426
    %1437 = vmatprep.subr.bf16.mxu0 0
    %1438 = vmatpush1.bf16.msra.mxu0 %v1425
    %1439 = vmatprep.subr.bf16.mxu0 0
    %1440 = vmatpush1.bf16.msra.mxu0 %v1424
    %1441 = vmatprep.subr.bf16.mxu0 0
    %1442 = vmatpush1.bf16.msra.mxu0 %v1423
    %1443 = vmatprep.subr.bf16.mxu0 0
    %1444 = vmatpush1.bf16.msra.mxu0 %v1422
    %1445 = vmatprep.subr.bf16.mxu0 0
    %1446 = vmatpush1.bf16.msra.mxu0 %v1421
    %1447 = vmatprep.subr.bf16.mxu0 0
    %1448 = vmatpush1.bf16.msra.mxu0 %v1420
    %1449 = vmatprep.subr.bf16.mxu0 0
    %1450 = vmatpush1.bf16.msra.mxu0 %v1419
    %1451 = vmatprep.subr.bf16.mxu0 0
    %1452 = vmatpush2.bf16.msra.mxu0 0
    %1453 = vmatprep.subr.bf16.mxu0 0
    %1454 = vmatpush2.bf16.msra.mxu0 0
    %1455 = vmatprep.subr.bf16.mxu0 0
    %1456 = vmatpush2.bf16.msra.mxu0 0
    %1457 = vmatprep.subr.bf16.mxu0 0
    %1458 = vmatpush2.bf16.msra.mxu0 0
    %1459 = vmatprep.subr.bf16.mxu0 0
    %1460 = vmatpush2.bf16.msra.mxu0 0
    %1461 = vmatprep.subr.bf16.mxu0 0
    %1462 = vmatpush2.bf16.msra.mxu0 0
    %1463 = vmatprep.subr.bf16.mxu0 0
    %1464 = vmatpush2.bf16.msra.mxu0 0
    %1465 = vmatprep.subr.bf16.mxu0 0
    %1466 = vmatpush2.bf16.msra.mxu0 0
    %1467 = vmatprep.mubr.bf16.mxu0 0
    %1468 = vmatmul.mubr.bf16.gmra.mxu0 %v1369
    %v1469 = vpop.f32.mrf.mxu0
    %v1470 = vadd.f32 0.0, %v1469
    %v1471 = vpop.f32.mrf.mxu0
    %v1472 = vpop.f32.mrf.mxu0
    %v1473 = vadd.f32 0.0, %v1472
    %v1474 = vpop.f32.mrf.mxu0
    %1475 = vmatprep.mubr.bf16.mxu0 0
    %1476 = vmatmul.mubr.bf16.gmra.mxu0 %v1370
    %v1477 = vpop.f32.mrf.mxu0
    %v1478 = vadd.f32 0.0, %v1477
    %v1479 = vpop.f32.mrf.mxu0
    %v1480 = vpop.f32.mrf.mxu0
    %v1481 = vadd.f32 0.0, %v1480
    %v1482 = vpop.f32.mrf.mxu0
    %1483 = vdwg.mxu0
    %v1484 = vld [vmem:[%s5] sm:$0x1]
    %v1486 = vlaneseq
    %v1487 = vshrl.u32 %v1486, 7
    %v1488 = vsub.s32 0, %v1487
    %v1489 = vrot.slane %v1484, %v1488
    %1491 = vmatprep.subr.mxu0 0.0
    %1492 = vmatpush1.msra.mxu0 0.0
    %1493 = vmatprep.subr.mxu0 0.0
    %1494 = vmatpush1.msra.mxu0 0.0
    %1495 = vmatprep.subr.mxu0 0.0
    %1496 = vmatpush1.msra.mxu0 0.0
    %1497 = vmatprep.subr.mxu0 0.0
    %1498 = vmatpush1.msra.mxu0 0.0
    %1499 = vmatprep.subr.mxu0 0.0
    %1500 = vmatpush1.msra.mxu0 0.0
    %1501 = vmatprep.subr.mxu0 0.0
    %1502 = vmatpush1.msra.mxu0 0.0
    %1503 = vmatprep.subr.mxu0 0.0
    %1504 = vmatpush1.msra.mxu0 0.0
    %1505 = vmatprep.subr.mxu0 0.0
    %1506 = vmatpush1.msra.mxu0 0.0
    %1507 = vmatprep.subr.mxu0 0.0
    %1508 = vmatpush1.msra.mxu0 0.0
    %1509 = vmatprep.subr.mxu0 0.0
    %1510 = vmatpush1.msra.mxu0 0.0
    %1511 = vmatprep.subr.mxu0 0.0
    %1512 = vmatpush1.msra.mxu0 0.0
    %1513 = vmatprep.subr.mxu0 0.0
    %1514 = vmatpush1.msra.mxu0 0.0
    %1515 = vmatprep.subr.mxu0 0.0
    %1516 = vmatpush1.msra.mxu0 %v1481
    %1517 = vmatprep.subr.mxu0 0.0
    %1518 = vmatpush1.msra.mxu0 %v1478
    %1519 = vmatprep.subr.mxu0 0.0
    %1520 = vmatpush1.msra.mxu0 %v1473
    %1521 = vmatprep.subr.mxu0 0.0
    %1522 = vmatpush1.msra.mxu0 %v1470
    %1523 = vmatprep.subr.mxu0 0.0
    %1524 = vmatpush2.msra.mxu0 0.0
    %1525 = vmatprep.subr.mxu0 0.0
    %1526 = vmatpush2.msra.mxu0 0.0
    %1527 = vmatprep.subr.mxu0 0.0
    %1528 = vmatpush2.msra.mxu0 0.0
    %1529 = vmatprep.subr.mxu0 0.0
    %1530 = vmatpush2.msra.mxu0 0.0
    %1531 = vmatprep.subr.mxu0 0.0
    %1532 = vmatpush2.msra.mxu0 0.0
    %1533 = vmatprep.subr.mxu0 0.0
    %1534 = vmatpush2.msra.mxu0 0.0
    %1535 = vmatprep.subr.mxu0 0.0
    %1536 = vmatpush2.msra.mxu0 0.0
    %1537 = vmatprep.subr.mxu0 0.0
    %1538 = vmatpush2.msra.mxu0 0.0
    %1539 = vmatprep.subr.mxu0 0.0
    %1540 = vmatpush2.msra.mxu0 0.0
    %1541 = vmatprep.subr.mxu0 0.0
    %1542 = vmatpush2.msra.mxu0 0.0
    %1543 = vmatprep.subr.mxu0 0.0
    %1544 = vmatpush2.msra.mxu0 0.0
    %1545 = vmatprep.subr.mxu0 0.0
    %1546 = vmatpush2.msra.mxu0 0.0
    %1547 = vmatprep.subr.mxu0 0.0
    %1548 = vmatpush2.msra.mxu0 0.0
    %1549 = vmatprep.subr.mxu0 0.0
    %1550 = vmatpush2.msra.mxu0 0.0
    %1551 = vmatprep.subr.mxu0 0.0
    %1552 = vmatpush2.msra.mxu0 0.0
    %1553 = vmatprep.subr.mxu0 0.0
    %1554 = vmatpush2.msra.mxu0 0.0
    %1555 = vmatprep.mubr.f32.mxu0 0.0
    %1556 = vmatmul.mubr.f32.gmra.mxu0 %v1269
    %v1557 = vpop.f32.mrf.mxu0
    %v1558 = vadd.f32 %v1489, %v1557
    %v1559 = vpop.f32.mrf.mxu0
    %1560 = vmatprep.mubr.f32.mxu0 0.0
    %1561 = vmatmul.mubr.f32.gmra.mxu0 %v1272
    %v1562 = vpop.f32.mrf.mxu0
    %v1563 = vadd.f32 %v1489, %v1562
    %v1564 = vpop.f32.mrf.mxu0
    %1565 = vmatprep.mubr.f32.mxu0 0.0
    %1566 = vmatmul.mubr.f32.gmra.mxu0 %v1275
    %v1567 = vpop.f32.mrf.mxu0
    %v1568 = vadd.f32 %v1489, %v1567
    %v1569 = vpop.f32.mrf.mxu0
    %1570 = vmatprep.mubr.f32.mxu0 0.0
    %1571 = vmatmul.mubr.f32.gmra.mxu0 %v1278
    %v1572 = vpop.f32.mrf.mxu0
    %v1573 = vadd.f32 %v1489, %v1572
    %v1574 = vpop.f32.mrf.mxu0
    %1575 = vdwg.mxu0
    %v1576 = vmax.f32 %v1558, 0.0
    %v1577 = vmax.f32 %v1563, 0.0
    %v1578 = vmax.f32 %v1568, 0.0
    %v1579 = vmax.f32 %v1573, 0.0
    %v1580 = vpack.c.bf16 %v1577, %v1576
    %v1581 = vpack.c.bf16 %v1579, %v1578
    %v1582 = vld [vmem:[%s6] sm:$0xf]
    %v1583 = vld [vmem:[%s6 + $0x4] sm:$0xf]
    %v1584 = vld [vmem:[%s6 + $0x8] sm:$0xf]
    %v1585 = vld [vmem:[%s6 + $0xc] sm:$0xf]
    %v1586 = vld [vmem:[%s6 + $0x10] sm:$0xf]
    %v1587 = vld [vmem:[%s6 + $0x14] sm:$0xf]
    %v1588 = vld [vmem:[%s6 + $0x18] sm:$0xf]
    %v1589 = vld [vmem:[%s6 + $0x1c] sm:$0xf]
    %v1590 = vld [vmem:[%s6 + $0x20] sm:$0xf]
    %v1591 = vld [vmem:[%s6 + $0x24] sm:$0xf]
    %v1592 = vld [vmem:[%s6 + $0x28] sm:$0xf]
    %v1593 = vld [vmem:[%s6 + $0x2c] sm:$0xf]
    %v1594 = vld [vmem:[%s6 + $0x30] sm:$0xf]
    %v1595 = vld [vmem:[%s6 + $0x34] sm:$0xf]
    %v1596 = vld [vmem:[%s6 + $0x38] sm:$0xf]
    %v1597 = vld [vmem:[%s6 + $0x3c] sm:$0xf]
    %v1614 = vunpack.c.l.b16 %v1582
    %v1615 = vunpack.c.l.b16 %v1583
    %v1616 = vunpack.c.l.b16 %v1584
    %v1617 = vunpack.c.l.b16 %v1585
    %v1618 = vunpack.c.l.b16 %v1586
    %v1619 = vunpack.c.l.b16 %v1587
    %v1620 = vunpack.c.l.b16 %v1588
    %v1621 = vunpack.c.l.b16 %v1589
    %v1622 = vunpack.c.l.b16 %v1590
    %v1623 = vunpack.c.l.b16 %v1591
    %v1624 = vunpack.c.l.b16 %v1592
    %v1625 = vunpack.c.l.b16 %v1593
    %v1626 = vunpack.c.l.b16 %v1594
    %v1627 = vunpack.c.l.b16 %v1595
    %v1628 = vunpack.c.l.b16 %v1596
    %v1629 = vunpack.c.l.b16 %v1597
    %v1630 = vpack.c.b16 %v1615, %v1614
    %v1631 = vpack.c.b16 %v1617, %v1616
    %v1632 = vpack.c.b16 %v1619, %v1618
    %v1633 = vpack.c.b16 %v1621, %v1620
    %v1634 = vpack.c.b16 %v1623, %v1622
    %v1635 = vpack.c.b16 %v1625, %v1624
    %v1636 = vpack.c.b16 %v1627, %v1626
    %v1637 = vpack.c.b16 %v1629, %v1628
    %1646 = vmatprep.subr.bf16.mxu0 0
    %1647 = vmatpush1.bf16.msra.mxu0 %v1637
    %1648 = vmatprep.subr.bf16.mxu0 0
    %1649 = vmatpush1.bf16.msra.mxu0 %v1636
    %1650 = vmatprep.subr.bf16.mxu0 0
    %1651 = vmatpush1.bf16.msra.mxu0 %v1635
    %1652 = vmatprep.subr.bf16.mxu0 0
    %1653 = vmatpush1.bf16.msra.mxu0 %v1634
    %1654 = vmatprep.subr.bf16.mxu0 0
    %1655 = vmatpush1.bf16.msra.mxu0 %v1633
    %1656 = vmatprep.subr.bf16.mxu0 0
    %1657 = vmatpush1.bf16.msra.mxu0 %v1632
    %1658 = vmatprep.subr.bf16.mxu0 0
    %1659 = vmatpush1.bf16.msra.mxu0 %v1631
    %1660 = vmatprep.subr.bf16.mxu0 0
    %1661 = vmatpush1.bf16.msra.mxu0 %v1630
    %1662 = vmatprep.subr.bf16.mxu0 0
    %1663 = vmatpush2.bf16.msra.mxu0 0
    %1664 = vmatprep.subr.bf16.mxu0 0
    %1665 = vmatpush2.bf16.msra.mxu0 0
    %1666 = vmatprep.subr.bf16.mxu0 0
    %1667 = vmatpush2.bf16.msra.mxu0 0
    %1668 = vmatprep.subr.bf16.mxu0 0
    %1669 = vmatpush2.bf16.msra.mxu0 0
    %1670 = vmatprep.subr.bf16.mxu0 0
    %1671 = vmatpush2.bf16.msra.mxu0 0
    %1672 = vmatprep.subr.bf16.mxu0 0
    %1673 = vmatpush2.bf16.msra.mxu0 0
    %1674 = vmatprep.subr.bf16.mxu0 0
    %1675 = vmatpush2.bf16.msra.mxu0 0
    %1676 = vmatprep.subr.bf16.mxu0 0
    %1677 = vmatpush2.bf16.msra.mxu0 0
    %1678 = vmatprep.mubr.bf16.mxu0 0
    %1679 = vmatmul.mubr.bf16.gmra.mxu0 %v1580
    %v1680 = vpop.f32.mrf.mxu0
    %v1681 = vadd.f32 0.0, %v1680
    %v1682 = vpop.f32.mrf.mxu0
    %v1683 = vpop.f32.mrf.mxu0
    %v1684 = vadd.f32 0.0, %v1683
    %v1685 = vpop.f32.mrf.mxu0
    %1686 = vmatprep.mubr.bf16.mxu0 0
    %1687 = vmatmul.mubr.bf16.gmra.mxu0 %v1581
    %v1688 = vpop.f32.mrf.mxu0
    %v1689 = vadd.f32 0.0, %v1688
    %v1690 = vpop.f32.mrf.mxu0
    %v1691 = vpop.f32.mrf.mxu0
    %v1692 = vadd.f32 0.0, %v1691
    %v1693 = vpop.f32.mrf.mxu0
    %1694 = vdwg.mxu0
    %v1695 = vld [vmem:[%s7] sm:$0x1]
    %v1697 = vlaneseq
    %v1698 = vshrl.u32 %v1697, 7
    %v1699 = vsub.s32 0, %v1698
    %v1700 = vrot.slane %v1695, %v1699
    %1702 = vmatprep.subr.mxu0 0.0
    %1703 = vmatpush1.msra.mxu0 0.0
    %1704 = vmatprep.subr.mxu0 0.0
    %1705 = vmatpush1.msra.mxu0 0.0
    %1706 = vmatprep.subr.mxu0 0.0
    %1707 = vmatpush1.msra.mxu0 0.0
    %1708 = vmatprep.subr.mxu0 0.0
    %1709 = vmatpush1.msra.mxu0 0.0
    %1710 = vmatprep.subr.mxu0 0.0
    %1711 = vmatpush1.msra.mxu0 0.0
    %1712 = vmatprep.subr.mxu0 0.0
    %1713 = vmatpush1.msra.mxu0 0.0
    %1714 = vmatprep.subr.mxu0 0.0
    %1715 = vmatpush1.msra.mxu0 0.0
    %1716 = vmatprep.subr.mxu0 0.0
    %1717 = vmatpush1.msra.mxu0 0.0
    %1718 = vmatprep.subr.mxu0 0.0
    %1719 = vmatpush1.msra.mxu0 0.0
    %1720 = vmatprep.subr.mxu0 0.0
    %1721 = vmatpush1.msra.mxu0 0.0
    %1722 = vmatprep.subr.mxu0 0.0
    %1723 = vmatpush1.msra.mxu0 0.0
    %1724 = vmatprep.subr.mxu0 0.0
    %1725 = vmatpush1.msra.mxu0 0.0
    %1726 = vmatprep.subr.mxu0 0.0
    %1727 = vmatpush1.msra.mxu0 %v1692
    %1728 = vmatprep.subr.mxu0 0.0
    %1729 = vmatpush1.msra.mxu0 %v1689
    %1730 = vmatprep.subr.mxu0 0.0
    %1731 = vmatpush1.msra.mxu0 %v1684
    %1732 = vmatprep.subr.mxu0 0.0
    %1733 = vmatpush1.msra.mxu0 %v1681
    %1734 = vmatprep.subr.mxu0 0.0
    %1735 = vmatpush2.msra.mxu0 0.0
    %1736 = vmatprep.subr.mxu0 0.0
    %1737 = vmatpush2.msra.mxu0 0.0
    %1738 = vmatprep.subr.mxu0 0.0
    %1739 = vmatpush2.msra.mxu0 0.0
    %1740 = vmatprep.subr.mxu0 0.0
    %1741 = vmatpush2.msra.mxu0 0.0
    %1742 = vmatprep.subr.mxu0 0.0
    %1743 = vmatpush2.msra.mxu0 0.0
    %1744 = vmatprep.subr.mxu0 0.0
    %1745 = vmatpush2.msra.mxu0 0.0
    %1746 = vmatprep.subr.mxu0 0.0
    %1747 = vmatpush2.msra.mxu0 0.0
    %1748 = vmatprep.subr.mxu0 0.0
    %1749 = vmatpush2.msra.mxu0 0.0
    %1750 = vmatprep.subr.mxu0 0.0
    %1751 = vmatpush2.msra.mxu0 0.0
    %1752 = vmatprep.subr.mxu0 0.0
    %1753 = vmatpush2.msra.mxu0 0.0
    %1754 = vmatprep.subr.mxu0 0.0
    %1755 = vmatpush2.msra.mxu0 0.0
    %1756 = vmatprep.subr.mxu0 0.0
    %1757 = vmatpush2.msra.mxu0 0.0
    %1758 = vmatprep.subr.mxu0 0.0
    %1759 = vmatpush2.msra.mxu0 0.0
    %1760 = vmatprep.subr.mxu0 0.0
    %1761 = vmatpush2.msra.mxu0 0.0
    %1762 = vmatprep.subr.mxu0 0.0
    %1763 = vmatpush2.msra.mxu0 0.0
    %1764 = vmatprep.subr.mxu0 0.0
    %1765 = vmatpush2.msra.mxu0 0.0
    %1766 = vmatprep.mubr.f32.mxu0 0.0
    %1767 = vmatmul.mubr.f32.gmra.mxu0 %v1269
    %v1768 = vpop.f32.mrf.mxu0
    %v1769 = vadd.f32 %v1700, %v1768
    %v1770 = vpop.f32.mrf.mxu0
    %1771 = vmatprep.mubr.f32.mxu0 0.0
    %1772 = vmatmul.mubr.f32.gmra.mxu0 %v1272
    %v1773 = vpop.f32.mrf.mxu0
    %v1774 = vadd.f32 %v1700, %v1773
    %v1775 = vpop.f32.mrf.mxu0
    %1776 = vmatprep.mubr.f32.mxu0 0.0
    %1777 = vmatmul.mubr.f32.gmra.mxu0 %v1275
    %v1778 = vpop.f32.mrf.mxu0
    %v1779 = vadd.f32 %v1700, %v1778
    %v1780 = vpop.f32.mrf.mxu0
    %1781 = vmatprep.mubr.f32.mxu0 0.0
    %1782 = vmatmul.mubr.f32.gmra.mxu0 %v1278
    %v1783 = vpop.f32.mrf.mxu0
    %v1784 = vadd.f32 %v1700, %v1783
    %v1785 = vpop.f32.mrf.mxu0
    %1786 = vdwg.mxu0
    %v1787 = vmax.f32 %v1769, 0.0
    %v1788 = vmax.f32 %v1774, 0.0
    %v1789 = vmax.f32 %v1779, 0.0
    %v1790 = vmax.f32 %v1784, 0.0
    %v1791 = vpack.c.bf16 %v1788, %v1787
    %v1792 = vpack.c.bf16 %v1790, %v1789
    %v1793 = vld [vmem:[%s8] sm:$0xf]
    %v1794 = vld [vmem:[%s8 + $0x4] sm:$0xf]
    %v1795 = vld [vmem:[%s8 + $0x8] sm:$0xf]
    %v1796 = vld [vmem:[%s8 + $0xc] sm:$0xf]
    %v1797 = vld [vmem:[%s8 + $0x10] sm:$0xf]
    %v1798 = vld [vmem:[%s8 + $0x14] sm:$0xf]
    %v1799 = vld [vmem:[%s8 + $0x18] sm:$0xf]
    %v1800 = vld [vmem:[%s8 + $0x1c] sm:$0xf]
    %v1801 = vld [vmem:[%s8 + $0x20] sm:$0xf]
    %v1802 = vld [vmem:[%s8 + $0x24] sm:$0xf]
    %v1803 = vld [vmem:[%s8 + $0x28] sm:$0xf]
    %v1804 = vld [vmem:[%s8 + $0x2c] sm:$0xf]
    %v1805 = vld [vmem:[%s8 + $0x30] sm:$0xf]
    %v1806 = vld [vmem:[%s8 + $0x34] sm:$0xf]
    %v1807 = vld [vmem:[%s8 + $0x38] sm:$0xf]
    %v1808 = vld [vmem:[%s8 + $0x3c] sm:$0xf]
    %v1809 = vld [vmem:[%s9] sm:$0x1]
    %v1811 = vlaneseq
    %v1812 = vshrl.u32 %v1811, 7
    %v1813 = vsub.s32 0, %v1812
    %v1814 = vrot.slane %v1809, %v1813
    %v1832 = vunpack.c.l.b16 %v1793
    %v1833 = vunpack.c.l.b16 %v1794
    %v1834 = vunpack.c.l.b16 %v1795
    %v1835 = vunpack.c.l.b16 %v1796
    %v1836 = vunpack.c.l.b16 %v1797
    %v1837 = vunpack.c.l.b16 %v1798
    %v1838 = vunpack.c.l.b16 %v1799
    %v1839 = vunpack.c.l.b16 %v1800
    %v1840 = vunpack.c.l.b16 %v1801
    %v1841 = vunpack.c.l.b16 %v1802
    %v1842 = vunpack.c.l.b16 %v1803
    %v1843 = vunpack.c.l.b16 %v1804
    %v1844 = vunpack.c.l.b16 %v1805
    %v1845 = vunpack.c.l.b16 %v1806
    %v1846 = vunpack.c.l.b16 %v1807
    %v1847 = vunpack.c.l.b16 %v1808
    %v1848 = vpack.c.b16 %v1833, %v1832
    %v1849 = vpack.c.b16 %v1835, %v1834
    %v1850 = vpack.c.b16 %v1837, %v1836
    %v1851 = vpack.c.b16 %v1839, %v1838
    %v1852 = vpack.c.b16 %v1841, %v1840
    %v1853 = vpack.c.b16 %v1843, %v1842
    %v1854 = vpack.c.b16 %v1845, %v1844
    %v1855 = vpack.c.b16 %v1847, %v1846
    %1864 = vmatprep.subr.bf16.mxu0 0
    %1865 = vmatpush1.bf16.msra.mxu0 %v1855
    %1866 = vmatprep.subr.bf16.mxu0 0
    %1867 = vmatpush1.bf16.msra.mxu0 %v1854
    %1868 = vmatprep.subr.bf16.mxu0 0
    %1869 = vmatpush1.bf16.msra.mxu0 %v1853
    %1870 = vmatprep.subr.bf16.mxu0 0
    %1871 = vmatpush1.bf16.msra.mxu0 %v1852
    %1872 = vmatprep.subr.bf16.mxu0 0
    %1873 = vmatpush1.bf16.msra.mxu0 %v1851
    %1874 = vmatprep.subr.bf16.mxu0 0
    %1875 = vmatpush1.bf16.msra.mxu0 %v1850
    %1876 = vmatprep.subr.bf16.mxu0 0
    %1877 = vmatpush1.bf16.msra.mxu0 %v1849
    %1878 = vmatprep.subr.bf16.mxu0 0
    %1879 = vmatpush1.bf16.msra.mxu0 %v1848
    %1880 = vmatprep.subr.bf16.mxu0 0
    %1881 = vmatpush2.bf16.msra.mxu0 0
    %1882 = vmatprep.subr.bf16.mxu0 0
    %1883 = vmatpush2.bf16.msra.mxu0 0
    %1884 = vmatprep.subr.bf16.mxu0 0
    %1885 = vmatpush2.bf16.msra.mxu0 0
    %1886 = vmatprep.subr.bf16.mxu0 0
    %1887 = vmatpush2.bf16.msra.mxu0 0
    %1888 = vmatprep.subr.bf16.mxu0 0
    %1889 = vmatpush2.bf16.msra.mxu0 0
    %1890 = vmatprep.subr.bf16.mxu0 0
    %1891 = vmatpush2.bf16.msra.mxu0 0
    %1892 = vmatprep.subr.bf16.mxu0 0
    %1893 = vmatpush2.bf16.msra.mxu0 0
    %1894 = vmatprep.subr.bf16.mxu0 0
    %1895 = vmatpush2.bf16.msra.mxu0 0
    %1896 = vmatprep.mubr.bf16.mxu0 0
    %1897 = vmatmul.mubr.bf16.gmra.mxu0 %v1791
    %v1898 = vpop.f32.mrf.mxu0
    %v1899 = vadd.f32 %v1814, %v1898
    %v1900 = vpop.f32.mrf.mxu0
    %v1901 = vpop.f32.mrf.mxu0
    %v1902 = vadd.f32 %v1814, %v1901
    %v1903 = vpop.f32.mrf.mxu0
    %1904 = vmatprep.mubr.bf16.mxu0 0
    %1905 = vmatmul.mubr.bf16.gmra.mxu0 %v1792
    %v1906 = vpop.f32.mrf.mxu0
    %v1907 = vadd.f32 %v1814, %v1906
    %v1908 = vpop.f32.mrf.mxu0
    %v1909 = vpop.f32.mrf.mxu0
    %v1910 = vadd.f32 %v1814, %v1909
    %v1911 = vpop.f32.mrf.mxu0
    %1912 = vdwg.mxu0
    %1913 = vst [vmem:[%s10] sm:$0xff] %v1899
    %1914 = vst [vmem:[%s10 + $0x8] sm:$0xff] %v1902
    %1915 = vst [vmem:[%s10 + $0x10] sm:$0xff] %v1907
    %1916 = vst [vmem:[%s10 + $0x18] sm:$0xff] %v1910
    // Predicated region
    $region46: #{net_forward.1} parent=1 // pred_check
      _
    $region47: #{net_forward.1} parent=1 // pred_check_branch
      %1918 = sbr.rel (0) target = $region49
    $region48: #{net_forward.1} parent=1 // pred_region
      _
    $region49: #{net_forward.1} parent=1 // pred_fallthru
      _
    // Predicated region
    $region50: #{net_forward.1} parent=1 // pred_check
      _
    $region51: #{net_forward.1} parent=1 // pred_check_branch
      %1920 = sbr.rel (0) target = $region53
    $region52: #{net_forward.1} parent=1 // pred_region
      _
    $region53: #{net_forward.1} parent=1 // pred_fallthru
      _
    %1921 = vsyncpa [#allocation3], 1

</llo_original>
